<compile_context>
chip_gen: v7x
topology: tpu7x:2x2x1
jax: 0.10.0
libtpu: 0.0.40
codegen_flags: <defaults>
</compile_context>

<pallas_src>
import jax
import jax.numpy as jnp
from jax import lax
from jax.experimental import pallas as pl
from jax.experimental.pallas import tpu as pltpu

EPS = 1e-5
_NEG = float(jnp.finfo(jnp.float32).min)      # safe "-inf" fill for the running max
MATMUL_DTYPE = jnp.bfloat16                   # operand dtype for the big per-point matmuls
VMEM_LIMIT = 48 * 1024 * 1024                 # <= 48 MiB (v7x per-TC VMEM is 64 MiB)
MAX_TN = 1024                                 # point-tile size cap; sweep per generation


# ---------------------------------------------------------------------------
# Kernels
# ---------------------------------------------------------------------------
def _stn3_conv_max_kernel(x_ref, w1, s1, t1, w2, s2, t2, w3, s3, t3, gmax_ref):
    """Input STN conv stack (3->64->128->1024) + running max over point tiles."""
    n = pl.program_id(1)

    @pl.when(n == 0)
    def _init():
        gmax_ref[...] = jnp.full(gmax_ref.shape, _NEG, dtype=gmax_ref.dtype)

    x = x_ref[0]                                                            # (TN, 3) f32
    h = jnp.maximum(jnp.dot(x, w1[...], preferred_element_type=jnp.float32) * s1[...] + t1[...], 0.0)
    h = jnp.maximum(jnp.dot(h.astype(w2.dtype), w2[...],
                            preferred_element_type=jnp.float32) * s2[...] + t2[...], 0.0)
    h = jnp.maximum(jnp.dot(h.astype(w3.dtype), w3[...],
                            preferred_element_type=jnp.float32) * s3[...] + t3[...], 0.0)
    gmax_ref[...] = jnp.maximum(gmax_ref[...], jnp.max(h, axis=0, keepdims=True)[None])


def _stn64_conv_max_kernel(x_ref, w1e_ref, s1, t1,
                           wa, sa, ta, wb, sb, tb, wc, sc, tc, gmax_ref):
    """conv1 (with input transform folded into w1_eff) fused with the feature-STN conv stack
    (64->64->128->1024) + running max over point tiles.  h1 never touches HBM."""
    n = pl.program_id(1)

    @pl.when(n == 0)
    def _init():
        gmax_ref[...] = jnp.full(gmax_ref.shape, _NEG, dtype=gmax_ref.dtype)

    x = x_ref[0]                                                            # (TN, 3) f32
    h1 = jnp.maximum(jnp.dot(x, w1e_ref[0],
                             preferred_element_type=jnp.float32) * s1[...] + t1[...], 0.0)
    h = jnp.maximum(jnp.dot(h1.astype(wa.dtype), wa[...],
                            preferred_element_type=jnp.float32) * sa[...] + ta[...], 0.0)
    h = jnp.maximum(jnp.dot(h.astype(wb.dtype), wb[...],
                            preferred_element_type=jnp.float32) * sb[...] + tb[...], 0.0)
    h = jnp.maximum(jnp.dot(h.astype(wc.dtype), wc[...],
                            preferred_element_type=jnp.float32) * sc[...] + tc[...], 0.0)
    gmax_ref[...] = jnp.maximum(gmax_ref[...], jnp.max(h, axis=0, keepdims=True)[None])


def _stn_fc_kernel(g_ref, fw1, fs1, ft1, fw2, fs2, ft2, fw3, fb3, out_ref):
    """Batched STN FC stage: the whole (B, 1024) global-feature matrix in one call (M = B)."""
    g = g_ref[...]                                                          # (B, 1024)
    f = jnp.maximum(jnp.dot(g, fw1[...], preferred_element_type=jnp.float32) * fs1[...] + ft1[...], 0.0)
    f = jnp.maximum(jnp.dot(f, fw2[...], preferred_element_type=jnp.float32) * fs2[...] + ft2[...], 0.0)
    # identity matrix is folded into fb3 (same for every batch element)
    out_ref[...] = jnp.dot(f, fw3[...], preferred_element_type=jnp.float32) + fb3[...]


def _head_kernel(valid_ref, x_ref, w1e_ref, s1, t1, w2e_ref, s2, t2, w3, s3, t3, out_ref):
    """Recompute h1 from x (+folded trans), conv2 with folded trans_feat, conv3+bn3, masked
    running max over valid point tiles.  Tiles entirely past valid_pts are skipped."""
    b = pl.program_id(0)
    n = pl.program_id(1)
    tn = x_ref.shape[1]
    n_pts = tn * pl.num_programs(1)

    @pl.when(n == 0)
    def _init():
        out_ref[...] = jnp.full(out_ref.shape, _NEG, dtype=out_ref.dtype)

    v = valid_ref[b, 0]
    v_eff = jnp.where(v == 0, n_pts, v)                                     # 0 means "all points"
    start = n * tn

    @pl.when(start < v_eff)
    def _compute():
        x = x_ref[0]                                                        # (TN, 3) f32
        h1 = jnp.maximum(jnp.dot(x, w1e_ref[0],
                                 preferred_element_type=jnp.float32) * s1[...] + t1[...], 0.0)
        h2 = jnp.maximum(jnp.dot(h1.astype(w2e_ref.dtype), w2e_ref[0],
                                 preferred_element_type=jnp.float32) * s2[...] + t2[...], 0.0)
        h3 = jnp.dot(h2.astype(w3.dtype), w3[...],
                     preferred_element_type=jnp.float32) * s3[...] + t3[...]  # (TN, 1024)
        idx = start + lax.broadcasted_iota(jnp.int32, h3.shape, 0)
        masked = jnp.where(idx < v_eff, h3, _NEG)
        out_ref[...] = jnp.maximum(out_ref[...], jnp.max(masked, axis=0, keepdims=True)[None])


# ---------------------------------------------------------------------------
# pallas_call wrappers
# ---------------------------------------------------------------------------
def _full_spec(arr):
    nd = arr.ndim
    return pl.BlockSpec(arr.shape, lambda *_args, _nd=nd: (0,) * _nd)


def _choose_tn(n, max_tn=MAX_TN):
    """Largest point-tile that divides N, is a multiple of 8, and is <= max_tn (else full N)."""
    if n <= max_tn:
        return n
    for t in range(max_tn - max_tn % 8, 7, -8):
        if n % t == 0:
            return t
    return n


def run_stn3_conv_max(x, conv_p, tn):
    B, N, C = x.shape
    w1, s1, t1, w2, s2, t2, w3, s3, t3 = conv_p
    w2 = w2.astype(MATMUL_DTYPE)
    w3 = w3.astype(MATMUL_DTYPE)
    weights = [w1, s1, t1, w2, s2, t2, w3, s3, t3]
    out = pl.pallas_call(
        _stn3_conv_max_kernel,
        out_shape=jax.ShapeDtypeStruct((B, 1, 1024), jnp.float32),
        grid=(B, N // tn),
        in_specs=[pl.BlockSpec((1, tn, C), lambda b, n: (b, n, 0))]
                + [_full_spec(w) for w in weights],
        out_specs=pl.BlockSpec((1, 1, 1024), lambda b, n: (b, 0, 0)),
        compiler_params=pltpu.CompilerParams(
            dimension_semantics=("parallel", "arbitrary"),
            vmem_limit_bytes=VMEM_LIMIT),
    )(x, *weights)
    return out.reshape(B, 1024)


def run_stn64_conv_max(x, w1_eff, conv1_st, fstn_conv_p, tn):
    B, N, C = x.shape
    s1, t1 = conv1_st
    wa, sa, ta, wb, sb, tb, wc, sc, tc = fstn_conv_p
    wa = wa.astype(MATMUL_DTYPE)
    wb = wb.astype(MATMUL_DTYPE)
    wc = wc.astype(MATMUL_DTYPE)
    weights = [s1, t1, wa, sa, ta, wb, sb, tb, wc, sc, tc]
    out = pl.pallas_call(
        _stn64_conv_max_kernel,
        out_shape=jax.ShapeDtypeStruct((B, 1, 1024), jnp.float32),
        grid=(B, N // tn),
        in_specs=[pl.BlockSpec((1, tn, C), lambda b, n: (b, n, 0)),
                  pl.BlockSpec((1, C, 64), lambda b, n: (b, 0, 0))]
                + [_full_spec(w) for w in weights],
        out_specs=pl.BlockSpec((1, 1, 1024), lambda b, n: (b, 0, 0)),
        compiler_params=pltpu.CompilerParams(
            dimension_semantics=("parallel", "arbitrary"),
            vmem_limit_bytes=VMEM_LIMIT),
    )(x, w1_eff, *weights)
    return out.reshape(B, 1024)


def run_stn_fc(g, fc_p, k):
    B = g.shape[0]
    fw1, fs1, ft1, fw2, fs2, ft2, fw3, fb3 = fc_p
    args = [g, fw1, fs1, ft1, fw2, fs2, ft2, fw3, fb3]
    out = pl.pallas_call(
        _stn_fc_kernel,
        out_shape=jax.ShapeDtypeStruct((B, k * k), jnp.float32),
        grid=(1,),
        in_specs=[_full_spec(a) for a in args],
        out_specs=pl.BlockSpec((B, k * k), lambda i: (0, 0)),
        compiler_params=pltpu.CompilerParams(vmem_limit_bytes=VMEM_LIMIT),
    )(*args)
    return out.reshape(B, k, k)


def run_head(x, valid, w1_eff, conv1_st, w2_eff, conv2_st, conv3_p, tn):
    B, N, C = x.shape
    s1, t1 = conv1_st
    s2, t2 = conv2_st
    w3, s3, t3 = conv3_p
    w2e = w2_eff.astype(MATMUL_DTYPE)
    w3 = w3.astype(MATMUL_DTYPE)
    in_specs = [pl.BlockSpec((1, tn, C), lambda b, n, *_: (b, n, 0)),
                pl.BlockSpec((1, C, 64), lambda b, n, *_: (b, 0, 0)),
                _full_spec(s1), _full_spec(t1),
                pl.BlockSpec((1, 64, 128), lambda b, n, *_: (b, 0, 0)),
                _full_spec(s2), _full_spec(t2),
                _full_spec(w3), _full_spec(s3), _full_spec(t3)]
    grid_spec = pltpu.PrefetchScalarGridSpec(
        num_scalar_prefetch=1,
        grid=(B, N // tn),
        in_specs=in_specs,
        out_specs=pl.BlockSpec((1, 1, 1024), lambda b, n, *_: (b, 0, 0)),
    )
    out = pl.pallas_call(
        _head_kernel,
        out_shape=jax.ShapeDtypeStruct((B, 1, 1024), jnp.float32),
        grid_spec=grid_spec,
        compiler_params=pltpu.CompilerParams(
            dimension_semantics=("parallel", "arbitrary"),
            vmem_limit_bytes=VMEM_LIMIT),
    )(valid, x, w1_eff, s1, t1, w2e, s2, t2, w3, s3, t3)
    return out.reshape(B, 1024)


_HI = lax.Precision.HIGHEST


def pointnetfeat_pallas(x, valid_pts, params, max_tn=MAX_TN):
    """x: (B, N, 3) float32;  valid_pts: (B, 1) int32 (0 == use all points)."""
    B, N, _ = x.shape
    tn = _choose_tn(N, max_tn)
    stn3_p, stn64_p = params["stn3"], params["stn64"]
    w1, s1, t1 = params["conv1"]
    w2, s2, t2 = params["conv2"]

    # Input STN: tiled conv stack + running max, then batched FC stage.
    g3 = run_stn3_conv_max(x, stn3_p[0:9], tn)                          # (B, 1024)
    trans = run_stn_fc(g3, stn3_p[9:17], 3)                             # (B, 3, 3)

    # Fold input transform into conv1: (x @ trans) @ w1 == x @ (trans @ w1).  Tiny einsum.
    w1_eff = jnp.einsum("bij,jk->bik", trans, w1, precision=_HI)        # (B, 3, 64)

    # Feature STN: h1 recomputed in-kernel from x (no HBM round-trip), tiled conv stack + max, FC.
    g64 = run_stn64_conv_max(x, w1_eff, (s1, t1), stn64_p[0:9], tn)     # (B, 1024)
    trans_feat = run_stn_fc(g64, stn64_p[9:17], 64)                     # (B, 64, 64)

    # Fold feature transform into conv2: (h1 @ trans_feat) @ w2 == h1 @ (trans_feat @ w2).
    w2_eff = jnp.einsum("bij,jk->bik", trans_feat, w2, precision=_HI)   # (B, 64, 128)

    z = run_head(x, valid_pts, w1_eff, (s1, t1), w2_eff, (s2, t2),
                 params["conv3"], tn)                                   # (B, 1024)
    return z, trans, trans_feat


# ---------------------------------------------------------------------------
# Deterministic parameter init (Conv1d/Linear weights + inference-mode BN folded)
# ---------------------------------------------------------------------------
def _init_layer(key, cin, cout):
    kw, kb, kg, kbt, km, kv = jax.random.split(key, 6)
    w = jax.random.normal(kw, (cin, cout), jnp.float32) / (float(cin) ** 0.5)
    b = 0.1 * jax.random.normal(kb, (cout,), jnp.float32)
    gamma = 1.0 + 0.1 * jax.random.normal(kg, (cout,), jnp.float32)
    beta = 0.1 * jax.random.normal(kbt, (cout,), jnp.float32)
    mean = 0.1 * jax.random.normal(km, (cout,), jnp.float32)
    var = 1.0 + 0.1 * jnp.abs(jax.random.normal(kv, (cout,), jnp.float32))
    s = gamma / jnp.sqrt(var + EPS)
    t = beta - mean * s + b * s                                  # conv bias folded in too
    return w, s.reshape(1, cout), t.reshape(1, cout)


def _init_fc3(key, cin, k):
    kw, kb = jax.random.split(key)
    w = 0.01 * jax.random.normal(kw, (cin, k * k), jnp.float32) / (float(cin) ** 0.5)
    b = 0.01 * jax.random.normal(kb, (k * k,), jnp.float32)
    fb3 = (b + jnp.eye(k, dtype=jnp.float32).reshape(-1)).reshape(1, k * k)   # + identity folded
    return w, fb3


def _init_stn(key, k):
    keys = jax.random.split(key, 6)
    p = []
    p += list(_init_layer(keys[0], k, 64))
    p += list(_init_layer(keys[1], 64, 128))
    p += list(_init_layer(keys[2], 128, 1024))
    p += list(_init_layer(keys[3], 1024, 512))
    p += list(_init_layer(keys[4], 512, 256))
    p += list(_init_fc3(keys[5], 256, k))
    return tuple(p)


def init_params(key):
    k = jax.random.split(key, 5)
    return {
        "stn3": _init_stn(k[0], 3),
        "conv1": _init_layer(k[1], 3, 64),
        "stn64": _init_stn(k[2], 64),
        "conv2": _init_layer(k[3], 64, 128),
        "conv3": _init_layer(k[4], 128, 1024),
    }


# ---------------------------------------------------------------------------
# Pure-JAX reference (for a correctness check)
# ---------------------------------------------------------------------------
def _mlp_layer_ref(x, w, s, t, relu=True):
    y = jnp.matmul(x, w, precision=_HI) * s + t
    return jnp.maximum(y, 0.0) if relu else y


def _stn_ref(x, p, k):
    h = _mlp_layer_ref(x, p[0], p[1], p[2])
    h = _mlp_layer_ref(h, p[3], p[4], p[5])
    h = _mlp_layer_ref(h, p[6], p[7], p[8])
    g = jnp.max(h, axis=1)
    f = _mlp_layer_ref(g, p[9], p[10], p[11])
    f = _mlp_layer_ref(f, p[12], p[13], p[14])
    f = jnp.matmul(f, p[15], precision=_HI) + p[16]
    return f.reshape(-1, k, k)


def pointnetfeat_ref(x, valid_pts, params):
    trans = _stn_ref(x, params["stn3"], 3)
    xt = jnp.einsum("bnc,bcd->bnd", x, trans, precision=_HI)
    h1 = _mlp_layer_ref(xt, *params["conv1"])
    trans_feat = _stn_ref(h1, params["stn64"], 64)
    h1t = jnp.einsum("bnc,bcd->bnd", h1, trans_feat, precision=_HI)
    h2 = _mlp_layer_ref(h1t, *params["conv2"])
    h3 = _mlp_layer_ref(h2, *params["conv3"], relu=False)
    B, N, _ = h3.shape
    v = valid_pts[:, 0]
    v_eff = jnp.where(v == 0, N, v)
    idx = jnp.arange(N, dtype=jnp.int32).reshape(1, N, 1)
    masked = jnp.where(idx < v_eff[:, None, None], h3, -jnp.inf)
    z = jnp.max(masked, axis=1)
    return z, trans, trans_feat


# ---------------------------------------------------------------------------
if __name__ == "__main__":
    B, N = 2, 16
    key = jax.random.PRNGKey(0)
    kx, kp = jax.random.split(key)
    # PyTorch layout would be (B, 3, N); our chosen kernel layout is (B, N, 3).
    x = jax.random.normal(kx, (B, N, 3), jnp.float32)
    valid_pts = jnp.array([[0], [10]], dtype=jnp.int32)   # batch 0: all points, batch 1: first 10
    params = init_params(kp)

    z, trans, trans_feat = pointnetfeat_pallas(x, valid_pts, params)
    jax.block_until_ready((z, trans, trans_feat))

    assert z.shape == (B, 1024)
    assert trans.shape == (B, 3, 3)
    assert trans_feat.shape == (B, 64, 64)
    assert bool(jnp.all(jnp.isfinite(z)))

    z_r, trans_r, tf_r = pointnetfeat_ref(x, valid_pts, params)
    # Tolerance accounts for bf16 operands (f32 accumulation) on the big per-point matmuls.
    for got, want in ((trans, trans_r), (trans_feat, tf_r), (z, z_r)):
        err = float(jnp.max(jnp.abs(got - want)))
        assert jnp.allclose(got, want, rtol=5e-2, atol=5e-2), f"max abs err {err}"

    print("KERNEL_OK")
</pallas_src>

<mosaic_0001>
module attributes {stable_mosaic.version = 11 : i64} {
  func.func @_stn3_conv_max_kernel(%arg0: i32, %arg1: i32, %arg2: memref<1x16x3xf32, #tpu.memory_space<vmem>>, %arg3: memref<3x64xf32, #tpu.memory_space<vmem>>, %arg4: memref<1x64xf32, #tpu.memory_space<vmem>>, %arg5: memref<1x64xf32, #tpu.memory_space<vmem>>, %arg6: memref<64x128xbf16, #tpu.memory_space<vmem>>, %arg7: memref<1x128xf32, #tpu.memory_space<vmem>>, %arg8: memref<1x128xf32, #tpu.memory_space<vmem>>, %arg9: memref<128x1024xbf16, #tpu.memory_space<vmem>>, %arg10: memref<1x1024xf32, #tpu.memory_space<vmem>>, %arg11: memref<1x1024xf32, #tpu.memory_space<vmem>>, %arg12: memref<1x1x1024xf32, #tpu.memory_space<vmem>>) attributes {dimension_semantics = [#tpu.dimension_semantics<parallel>, #tpu.dimension_semantics<arbitrary>], iteration_bounds = array<i64: 2, 1>, scalar_prefetch = 0 : i64, scratch_operands = 0 : i64, tpu.core_type = #tpu.core_type<tc>, window_params = [{transform_indices = @transform_0, window_bounds = array<i64: 1, 16, 3>}, {pipeline_mode = #tpu.pipeline_mode<synchronous>, transform_indices = @transform_1, window_bounds = array<i64: 3, 64>}, {pipeline_mode = #tpu.pipeline_mode<synchronous>, transform_indices = @transform_2, window_bounds = array<i64: 1, 64>}, {pipeline_mode = #tpu.pipeline_mode<synchronous>, transform_indices = @transform_3, window_bounds = array<i64: 1, 64>}, {pipeline_mode = #tpu.pipeline_mode<synchronous>, transform_indices = @transform_4, window_bounds = array<i64: 64, 128>}, {pipeline_mode = #tpu.pipeline_mode<synchronous>, transform_indices = @transform_5, window_bounds = array<i64: 1, 128>}, {pipeline_mode = #tpu.pipeline_mode<synchronous>, transform_indices = @transform_6, window_bounds = array<i64: 1, 128>}, {pipeline_mode = #tpu.pipeline_mode<synchronous>, transform_indices = @transform_7, window_bounds = array<i64: 128, 1024>}, {pipeline_mode = #tpu.pipeline_mode<synchronous>, transform_indices = @transform_8, window_bounds = array<i64: 1, 1024>}, {pipeline_mode = #tpu.pipeline_mode<synchronous>, transform_indices = @transform_9, window_bounds = array<i64: 1, 1024>}, {transform_indices = @transform_10, window_bounds = array<i64: 1, 1, 1024>}]} {
    %c0_i32 = arith.constant 0 : i32
    %0 = arith.cmpi eq, %arg1, %c0_i32 : i32
    %1 = arith.extui %0 : i1 to i32
    %c0_i32_0 = arith.constant 0 : i32
    %2 = arith.cmpi ne, %1, %c0_i32_0 : i32
    scf.if %2 {
      %cst_33 = arith.constant -3.40282347E+38 : f32
      %43 = vector.broadcast %cst_33 : f32 to vector<1x1x1024xf32>
      %c0_34 = arith.constant 0 : index
      %c0_35 = arith.constant 0 : index
      %c0_36 = arith.constant 0 : index
      %44 = vector.load %arg12[%c0_34, %c0_35, %c0_36] : memref<1x1x1024xf32, #tpu.memory_space<vmem>>, vector<1x1x1024xf32>
      tpu.vector_store %arg12[%c0_34, %c0_35, %c0_36], %43 {strides = array<i32>} : memref<1x1x1024xf32, #tpu.memory_space<vmem>>, vector<1x1x1024xf32>,
    } else {
    }
    %c0 = arith.constant 0 : index
    %c0_1 = arith.constant 0 : index
    %c0_2 = arith.constant 0 : index
    %3 = vector.load %arg2[%c0, %c0_1, %c0_2] : memref<1x16x3xf32, #tpu.memory_space<vmem>>, vector<1x16x3xf32>
    %4 = vector.shape_cast %3 : vector<1x16x3xf32> to vector<16x3xf32>
    %c0_3 = arith.constant 0 : index
    %c0_4 = arith.constant 0 : index
    %5 = vector.load %arg3[%c0_3, %c0_4] : memref<3x64xf32, #tpu.memory_space<vmem>>, vector<3x64xf32>
    %cst = arith.constant dense<0.000000e+00> : vector<16x64xf32>
    %6 = tpu.matmul %4, %5, %cst {dimension_numbers = #tpu.dot_dimension_numbers<[1], [0], [0], [1], [0, 0, 1, 1], [], []>} : vector<16x3xf32>, vector<3x64xf32>, vector<16x64xf32> -> vector<16x64xf32>
    %c0_5 = arith.constant 0 : index
    %c0_6 = arith.constant 0 : index
    %7 = vector.load %arg4[%c0_5, %c0_6] : memref<1x64xf32, #tpu.memory_space<vmem>>, vector<1x64xf32>
    %8 = vector.broadcast %7 : vector<1x64xf32> to vector<16x64xf32>
    %9 = arith.mulf %6, %8 : vector<16x64xf32>
    %c0_7 = arith.constant 0 : index
    %c0_8 = arith.constant 0 : index
    %10 = vector.load %arg5[%c0_7, %c0_8] : memref<1x64xf32, #tpu.memory_space<vmem>>, vector<1x64xf32>
    %11 = vector.broadcast %10 : vector<1x64xf32> to vector<16x64xf32>
    %12 = arith.addf %9, %11 : vector<16x64xf32>
    %cst_9 = arith.constant 0.000000e+00 : f32
    %13 = vector.broadcast %cst_9 : f32 to vector<16x64xf32>
    %14 = arith.maximumf %12, %13 : vector<16x64xf32>
    %15 = arith.truncf %14 : vector<16x64xf32> to vector<16x64xbf16>
    %c0_10 = arith.constant 0 : index
    %c0_11 = arith.constant 0 : index
    %16 = vector.load %arg6[%c0_10, %c0_11] : memref<64x128xbf16, #tpu.memory_space<vmem>>, vector<64x128xbf16>
    %cst_12 = arith.constant dense<0.000000e+00> : vector<16x128xf32>
    %17 = tpu.matmul %15, %16, %cst_12 {dimension_numbers = #tpu.dot_dimension_numbers<[1], [0], [0], [1], [0, 0, 1, 1], [], []>} : vector<16x64xbf16>, vector<64x128xbf16>, vector<16x128xf32> -> vector<16x128xf32>
    %c0_13 = arith.constant 0 : index
    %c0_14 = arith.constant 0 : index
    %18 = vector.load %arg7[%c0_13, %c0_14] : memref<1x128xf32, #tpu.memory_space<vmem>>, vector<1x128xf32>
    %19 = vector.broadcast %18 : vector<1x128xf32> to vector<16x128xf32>
    %20 = arith.mulf %17, %19 : vector<16x128xf32>
    %c0_15 = arith.constant 0 : index
    %c0_16 = arith.constant 0 : index
    %21 = vector.load %arg8[%c0_15, %c0_16] : memref<1x128xf32, #tpu.memory_space<vmem>>, vector<1x128xf32>
    %22 = vector.broadcast %21 : vector<1x128xf32> to vector<16x128xf32>
    %23 = arith.addf %20, %22 : vector<16x128xf32>
    %cst_17 = arith.constant 0.000000e+00 : f32
    %24 = vector.broadcast %cst_17 : f32 to vector<16x128xf32>
    %25 = arith.maximumf %23, %24 : vector<16x128xf32>
    %26 = arith.truncf %25 : vector<16x128xf32> to vector<16x128xbf16>
    %c0_18 = arith.constant 0 : index
    %c0_19 = arith.constant 0 : index
    %27 = vector.load %arg9[%c0_18, %c0_19] : memref<128x1024xbf16, #tpu.memory_space<vmem>>, vector<128x1024xbf16>
    %cst_20 = arith.constant dense<0.000000e+00> : vector<16x1024xf32>
    %28 = tpu.matmul %26, %27, %cst_20 {dimension_numbers = #tpu.dot_dimension_numbers<[1], [0], [0], [1], [0, 0, 1, 1], [], []>} : vector<16x128xbf16>, vector<128x1024xbf16>, vector<16x1024xf32> -> vector<16x1024xf32>
    %c0_21 = arith.constant 0 : index
    %c0_22 = arith.constant 0 : index
    %29 = vector.load %arg10[%c0_21, %c0_22] : memref<1x1024xf32, #tpu.memory_space<vmem>>, vector<1x1024xf32>
    %30 = vector.broadcast %29 : vector<1x1024xf32> to vector<16x1024xf32>
    %31 = arith.mulf %28, %30 : vector<16x1024xf32>
    %c0_23 = arith.constant 0 : index
    %c0_24 = arith.constant 0 : index
    %32 = vector.load %arg11[%c0_23, %c0_24] : memref<1x1024xf32, #tpu.memory_space<vmem>>, vector<1x1024xf32>
    %33 = vector.broadcast %32 : vector<1x1024xf32> to vector<16x1024xf32>
    %34 = arith.addf %31, %33 : vector<16x1024xf32>
    %cst_25 = arith.constant 0.000000e+00 : f32
    %35 = vector.broadcast %cst_25 : f32 to vector<16x1024xf32>
    %36 = arith.maximumf %34, %35 : vector<16x1024xf32>
    %c0_26 = arith.constant 0 : index
    %c0_27 = arith.constant 0 : index
    %c0_28 = arith.constant 0 : index
    %37 = vector.load %arg12[%c0_26, %c0_27, %c0_28] : memref<1x1x1024xf32, #tpu.memory_space<vmem>>, vector<1x1x1024xf32>
    %cst_29 = arith.constant dense<0xFF800000> : vector<1024xf32>
    %38 = vector.multi_reduction <maximumf>, %36, %cst_29 [0] : vector<16x1024xf32> to vector<1024xf32>
    %39 = vector.shape_cast %38 : vector<1024xf32> to vector<1x1024xf32>
    %40 = vector.shape_cast %39 : vector<1x1024xf32> to vector<1x1x1024xf32>
    %41 = arith.maximumf %37, %40 : vector<1x1x1024xf32>
    %c0_30 = arith.constant 0 : index
    %c0_31 = arith.constant 0 : index
    %c0_32 = arith.constant 0 : index
    %42 = vector.load %arg12[%c0_30, %c0_31, %c0_32] : memref<1x1x1024xf32, #tpu.memory_space<vmem>>, vector<1x1x1024xf32>
    tpu.vector_store %arg12[%c0_30, %c0_31, %c0_32], %41 {strides = array<i32>} : memref<1x1x1024xf32, #tpu.memory_space<vmem>>, vector<1x1x1024xf32>,
    return
  }
  func.func @transform_0(%arg0: i32, %arg1: i32) -> (i32, i32, i32) {
    %c0_i32 = arith.constant 0 : i32
    %c0_i32_0 = arith.constant 0 : i32
    return %arg0, %arg1, %c0_i32 : i32, i32, i32
  }
  func.func @transform_1(%arg0: i32, %arg1: i32) -> (i32, i32) {
    %c0_i32 = arith.constant 0 : i32
    %c0_i32_0 = arith.constant 0 : i32
    %c0_i32_1 = arith.constant 0 : i32
    return %c0_i32, %c0_i32_0 : i32, i32
  }
  func.func @transform_2(%arg0: i32, %arg1: i32) -> (i32, i32) {
    %c0_i32 = arith.constant 0 : i32
    %c0_i32_0 = arith.constant 0 : i32
    %c0_i32_1 = arith.constant 0 : i32
    return %c0_i32, %c0_i32_0 : i32, i32
  }
  func.func @transform_3(%arg0: i32, %arg1: i32) -> (i32, i32) {
    %c0_i32 = arith.constant 0 : i32
    %c0_i32_0 = arith.constant 0 : i32
    %c0_i32_1 = arith.constant 0 : i32
    return %c0_i32, %c0_i32_0 : i32, i32
  }
  func.func @transform_4(%arg0: i32, %arg1: i32) -> (i32, i32) {
    %c0_i32 = arith.constant 0 : i32
    %c0_i32_0 = arith.constant 0 : i32
    %c0_i32_1 = arith.constant 0 : i32
    return %c0_i32, %c0_i32_0 : i32, i32
  }
  func.func @transform_5(%arg0: i32, %arg1: i32) -> (i32, i32) {
    %c0_i32 = arith.constant 0 : i32
    %c0_i32_0 = arith.constant 0 : i32
    %c0_i32_1 = arith.constant 0 : i32
    return %c0_i32, %c0_i32_0 : i32, i32
  }
  func.func @transform_6(%arg0: i32, %arg1: i32) -> (i32, i32) {
    %c0_i32 = arith.constant 0 : i32
    %c0_i32_0 = arith.constant 0 : i32
    %c0_i32_1 = arith.constant 0 : i32
    return %c0_i32, %c0_i32_0 : i32, i32
  }
  func.func @transform_7(%arg0: i32, %arg1: i32) -> (i32, i32) {
    %c0_i32 = arith.constant 0 : i32
    %c0_i32_0 = arith.constant 0 : i32
    %c0_i32_1 = arith.constant 0 : i32
    return %c0_i32, %c0_i32_0 : i32, i32
  }
  func.func @transform_8(%arg0: i32, %arg1: i32) -> (i32, i32) {
    %c0_i32 = arith.constant 0 : i32
    %c0_i32_0 = arith.constant 0 : i32
    %c0_i32_1 = arith.constant 0 : i32
    return %c0_i32, %c0_i32_0 : i32, i32
  }
  func.func @transform_9(%arg0: i32, %arg1: i32) -> (i32, i32) {
    %c0_i32 = arith.constant 0 : i32
    %c0_i32_0 = arith.constant 0 : i32
    %c0_i32_1 = arith.constant 0 : i32
    return %c0_i32, %c0_i32_0 : i32, i32
  }
  func.func @transform_10(%arg0: i32, %arg1: i32) -> (i32, i32, i32) {
    %c0_i32 = arith.constant 0 : i32
    %c0_i32_0 = arith.constant 0 : i32
    %c0_i32_1 = arith.constant 0 : i32
    return %arg0, %c0_i32, %c0_i32_0 : i32, i32, i32
  }
}

</mosaic_0001>

<llo_original>
// kernel: tpu_custom_call.1
$region0: #{tpu_custom_call.1}
  #allocation0 [shape = 'u32[]', space=smem, size = 0x4, offset = 0x4, fixed_abs, tag = 'smem constant byte address 0x4 - core index']
  #allocation1 [shape = 'u32[144,128]{1,0:T(1,128)}', space=vmem, size = 0x12000, scoped, tag = 'internal scratch']
  %s0 = inlined_call_operand.vmem [shape: f32[2,16,3], index: 0, kind: input, shape index: {}]
  %s1 = inlined_call_operand.vmem [shape: f32[3,64], index: 1, kind: input, shape index: {}]
  %s2 = inlined_call_operand.vmem [shape: f32[1,64], index: 2, kind: input, shape index: {}]
  %s3 = inlined_call_operand.hbm [shape: f32[1,64], index: 3, kind: input, shape index: {}]
  %s4 = inlined_call_operand.vmem [shape: bf16[64,128], index: 4, kind: input, shape index: {}]
  %s5 = inlined_call_operand.vmem [shape: f32[1,128], index: 5, kind: input, shape index: {}]
  %s6 = inlined_call_operand.vmem [shape: f32[1,128], index: 6, kind: input, shape index: {}]
  %s7 = inlined_call_operand.hbm [shape: bf16[128,1024], index: 7, kind: input, shape index: {}]
  %s8 = inlined_call_operand.vmem [shape: f32[1,1024], index: 8, kind: input, shape index: {}]
  %s9 = inlined_call_operand.vmem [shape: f32[1,1024], index: 9, kind: input, shape index: {}]
  %s10 = inlined_call_operand.hbm [shape: f32[2,1,1024], index: 10, kind: output, shape index: {}]
  %s11 = sld [smem:[#allocation0]]
  $region85: #{tpu_custom_call.1} parent=0
    _
  %s13 = ssub.s32 1, %s11
  %s14 = scalar_select 0, %s13, %s11
  $region1: #{tpu_custom_call.1} parent=0
    #allocation2 [shape = 'u8[512]{0}', space=vmem, size = 0x400, scoped, tag = 'input window, operand 3, single buffered']
    #allocation3 [shape = 's32[2]{0}', space=sflag, size = 0x8, scoped, tag = 'scoped memory for tpu_custom_call.1']
    #allocation4 [shape = 's32[2]{0}', space=sflag, size = 0x8, scoped, tag = 'scoped memory for tpu_custom_call.1']
    #allocation5 [shape = 'u8[262144]{0}', space=vmem, size = 0x40000, scoped, tag = 'input window, operand 7, single buffered']
    #allocation6 [shape = 's32[1]{0}', space=sflag, size = 0x4, scoped, tag = 'scoped memory for tpu_custom_call.1']
    #allocation7 [shape = 'u8[8192]{0}', space=vmem, size = 0x2000, scoped, tag = 'output window, operand 0']
    %15 = vsyncpa [#allocation3], 0
    %16 = vsyncpa [#allocation6], 0
    %17 = vsyncpa [#allocation4], 0
    %s18 = scalar_lea.sflag [#allocation4], 1
    %19 = vsyncpa %s18, 0
    loop: start=0, step=1, limit=4
    $region2: #{tpu_custom_call.1} parent=1 // loop_pre_header
      _
    $region3: #{tpu_custom_call.1} parent=1 // loop_header
      %s21 = sphi 0, %s25
      %p22 = scmp.ge.s32.totalorder %s21, 4
      %s28 = sphi 0, %s40
      %s29 = sphi 0, %s36
      %s30 = sphi 0, %s28
      %s31 = sphi 0, %s29
      %s32 = sphi 0, %s30
      %s33 = sphi 0, %s31
      %s45 = sphi 0, %s47
      %s48 = sphi 0, %s45
      %s49 = sphi 0, %s48
      %s65 = sphi 0, %s49
      %s69 = sphi 0, %s69
      %s71 = sphi 0, %s69
      %s72 = sphi 0, %s71
      %s86 = sphi 0, %s72
      %s90 = sphi 0, %s90
      %s92 = sphi 0, %s90
      %s93 = sphi 0, %s92
      %s107 = sphi 0, %s93
      %s111 = sphi 0, %s111
      %s113 = sphi 0, %s111
      %s114 = sphi 0, %s113
      %s128 = sphi 0, %s114
      %s132 = sphi 0, %s132
      %s134 = sphi 0, %s132
      %s135 = sphi 0, %s134
      %s149 = sphi 0, %s135
      %s153 = sphi 0, %s153
      %s155 = sphi 0, %s153
      %s156 = sphi 0, %s155
      %s170 = sphi 0, %s156
      %s174 = sphi 0, %s174
      %s176 = sphi 0, %s174
      %s177 = sphi 0, %s176
      %s191 = sphi 0, %s177
      %s195 = sphi 0, %s195
      %s197 = sphi 0, %s195
      %s198 = sphi 0, %s197
      %s212 = sphi 0, %s198
      %s216 = sphi 0, %s216
      %s218 = sphi 0, %s216
      %s219 = sphi 0, %s218
      %s233 = sphi 0, %s219
      %s237 = sphi 0, %s237
      %s239 = sphi 0, %s237
      %s240 = sphi 0, %s239
      %s254 = sphi 0, %s240
      %s260 = sphi 0, %s262
      %s263 = sphi 0, %s260
      %s264 = sphi 0, %s263
      %s280 = sphi 0, %s264
    $region4: #{tpu_custom_call.1} parent=1 // loop_header_branch
      %24 = sbr.rel (%p22) target = $region8
    $region5: #{tpu_custom_call.1} parent=1 // loop_body
      %s26 = ssub.s32 %s21, 1
      %s27 = ssub.s32 %s21, 2
      %s34 = sadd.s32 1, %s29
      %p35 = scmp.ge.s32.totalorder %s34, 1
      %s36 = scalar_select %p35, 0, %s34
      %s37 = sadd.s32 1, %s28
      %s38 = scalar_select %p35, %s37, %s28
      %p39 = scmp.ge.s32.totalorder %s38, 2
      %s40 = scalar_select %p39, 0, %s38
      %s41 = ssub.s32 %s28, %s40
      %s42 = ssub.s32 %s29, %s36
      %s43 = sor.u32 %s41, %s42
      %p44 = scmp.eq.s32.totalorder %s43, 0
      %s46 = sadd.s32 %s45, 1
      %s47 = scalar_select %p44, %s45, %s46
      %p50 = pneg %p44
      %p51 = scmp.eq.s32.totalorder %s21, 1
      %p52 = por %p50, %p51
      %p53 = scmp.ne.s32.totalorder %s45, %s48
      %p54 = scmp.eq.s32.totalorder %s21, 0
      %p55 = por %p53, %p54
      %p56 = scmp.ne.s32.totalorder %s45, %s48
      %p57 = scmp.eq.s32.totalorder %s26, 1
      %p58 = por %p56, %p57
      %p59 = scmp.ne.s32.totalorder %s48, %s49
      %p60 = scmp.eq.s32.totalorder %s26, 0
      %p61 = por %p59, %p60
      %p62 = scmp.ne.s32.totalorder %s48, %s49
      %p63 = scmp.eq.s32.totalorder %s27, 1
      %p64 = por %p62, %p63
      %p66 = scmp.ne.s32.totalorder %s49, %s65
      %p67 = scmp.eq.s32.totalorder %s27, 0
      %p68 = por %p66, %p67
      %s70 = sadd.s32 %s69, 1
      %p73 = scmp.eq.s32.totalorder %s21, 1
      %p74 = scmp.ne.s32.totalorder %s69, %s71
      %p75 = scmp.eq.s32.totalorder %s21, 0
      %p76 = por %p74, %p75
      %p77 = scmp.ne.s32.totalorder %s69, %s71
      %p78 = scmp.eq.s32.totalorder %s26, 1
      %p79 = por %p77, %p78
      %p80 = scmp.ne.s32.totalorder %s71, %s72
      %p81 = scmp.eq.s32.totalorder %s26, 0
      %p82 = por %p80, %p81
      %p83 = scmp.ne.s32.totalorder %s71, %s72
      %p84 = scmp.eq.s32.totalorder %s27, 1
      %p85 = por %p83, %p84
      %p87 = scmp.ne.s32.totalorder %s72, %s86
      %p88 = scmp.eq.s32.totalorder %s27, 0
      %p89 = por %p87, %p88
      %s91 = sadd.s32 %s90, 1
      %p94 = scmp.eq.s32.totalorder %s21, 1
      %p95 = scmp.ne.s32.totalorder %s90, %s92
      %p96 = scmp.eq.s32.totalorder %s21, 0
      %p97 = por %p95, %p96
      %p98 = scmp.ne.s32.totalorder %s90, %s92
      %p99 = scmp.eq.s32.totalorder %s26, 1
      %p100 = por %p98, %p99
      %p101 = scmp.ne.s32.totalorder %s92, %s93
      %p102 = scmp.eq.s32.totalorder %s26, 0
      %p103 = por %p101, %p102
      %p104 = scmp.ne.s32.totalorder %s92, %s93
      %p105 = scmp.eq.s32.totalorder %s27, 1
      %p106 = por %p104, %p105
      %p108 = scmp.ne.s32.totalorder %s93, %s107
      %p109 = scmp.eq.s32.totalorder %s27, 0
      %p110 = por %p108, %p109
      %s112 = sadd.s32 %s111, 1
      %p115 = scmp.eq.s32.totalorder %s21, 1
      %p116 = scmp.ne.s32.totalorder %s111, %s113
      %p117 = scmp.eq.s32.totalorder %s21, 0
      %p118 = por %p116, %p117
      %p119 = scmp.ne.s32.totalorder %s111, %s113
      %p120 = scmp.eq.s32.totalorder %s26, 1
      %p121 = por %p119, %p120
      %p122 = scmp.ne.s32.totalorder %s113, %s114
      %p123 = scmp.eq.s32.totalorder %s26, 0
      %p124 = por %p122, %p123
      %p125 = scmp.ne.s32.totalorder %s113, %s114
      %p126 = scmp.eq.s32.totalorder %s27, 1
      %p127 = por %p125, %p126
      %p129 = scmp.ne.s32.totalorder %s114, %s128
      %p130 = scmp.eq.s32.totalorder %s27, 0
      %p131 = por %p129, %p130
      %s133 = sadd.s32 %s132, 1
      %p136 = scmp.eq.s32.totalorder %s21, 1
      %p137 = scmp.ne.s32.totalorder %s132, %s134
      %p138 = scmp.eq.s32.totalorder %s21, 0
      %p139 = por %p137, %p138
      %p140 = scmp.ne.s32.totalorder %s132, %s134
      %p141 = scmp.eq.s32.totalorder %s26, 1
      %p142 = por %p140, %p141
      %p143 = scmp.ne.s32.totalorder %s134, %s135
      %p144 = scmp.eq.s32.totalorder %s26, 0
      %p145 = por %p143, %p144
      %p146 = scmp.ne.s32.totalorder %s134, %s135
      %p147 = scmp.eq.s32.totalorder %s27, 1
      %p148 = por %p146, %p147
      %p150 = scmp.ne.s32.totalorder %s135, %s149
      %p151 = scmp.eq.s32.totalorder %s27, 0
      %p152 = por %p150, %p151
      %s154 = sadd.s32 %s153, 1
      %p157 = scmp.eq.s32.totalorder %s21, 1
      %p158 = scmp.ne.s32.totalorder %s153, %s155
      %p159 = scmp.eq.s32.totalorder %s21, 0
      %p160 = por %p158, %p159
      %p161 = scmp.ne.s32.totalorder %s153, %s155
      %p162 = scmp.eq.s32.totalorder %s26, 1
      %p163 = por %p161, %p162
      %p164 = scmp.ne.s32.totalorder %s155, %s156
      %p165 = scmp.eq.s32.totalorder %s26, 0
      %p166 = por %p164, %p165
      %p167 = scmp.ne.s32.totalorder %s155, %s156
      %p168 = scmp.eq.s32.totalorder %s27, 1
      %p169 = por %p167, %p168
      %p171 = scmp.ne.s32.totalorder %s156, %s170
      %p172 = scmp.eq.s32.totalorder %s27, 0
      %p173 = por %p171, %p172
      %s175 = sadd.s32 %s174, 1
      %p178 = scmp.eq.s32.totalorder %s21, 1
      %p179 = scmp.ne.s32.totalorder %s174, %s176
      %p180 = scmp.eq.s32.totalorder %s21, 0
      %p181 = por %p179, %p180
      %p182 = scmp.ne.s32.totalorder %s174, %s176
      %p183 = scmp.eq.s32.totalorder %s26, 1
      %p184 = por %p182, %p183
      %p185 = scmp.ne.s32.totalorder %s176, %s177
      %p186 = scmp.eq.s32.totalorder %s26, 0
      %p187 = por %p185, %p186
      %p188 = scmp.ne.s32.totalorder %s176, %s177
      %p189 = scmp.eq.s32.totalorder %s27, 1
      %p190 = por %p188, %p189
      %p192 = scmp.ne.s32.totalorder %s177, %s191
      %p193 = scmp.eq.s32.totalorder %s27, 0
      %p194 = por %p192, %p193
      %s196 = sadd.s32 %s195, 1
      %p199 = scmp.eq.s32.totalorder %s21, 1
      %p200 = scmp.ne.s32.totalorder %s195, %s197
      %p201 = scmp.eq.s32.totalorder %s21, 0
      %p202 = por %p200, %p201
      %p203 = scmp.ne.s32.totalorder %s195, %s197
      %p204 = scmp.eq.s32.totalorder %s26, 1
      %p205 = por %p203, %p204
      %p206 = scmp.ne.s32.totalorder %s197, %s198
      %p207 = scmp.eq.s32.totalorder %s26, 0
      %p208 = por %p206, %p207
      %p209 = scmp.ne.s32.totalorder %s197, %s198
      %p210 = scmp.eq.s32.totalorder %s27, 1
      %p211 = por %p209, %p210
      %p213 = scmp.ne.s32.totalorder %s198, %s212
      %p214 = scmp.eq.s32.totalorder %s27, 0
      %p215 = por %p213, %p214
      %s217 = sadd.s32 %s216, 1
      %p220 = scmp.eq.s32.totalorder %s21, 1
      %p221 = scmp.ne.s32.totalorder %s216, %s218
      %p222 = scmp.eq.s32.totalorder %s21, 0
      %p223 = por %p221, %p222
      %p224 = scmp.ne.s32.totalorder %s216, %s218
      %p225 = scmp.eq.s32.totalorder %s26, 1
      %p226 = por %p224, %p225
      %p227 = scmp.ne.s32.totalorder %s218, %s219
      %p228 = scmp.eq.s32.totalorder %s26, 0
      %p229 = por %p227, %p228
      %p230 = scmp.ne.s32.totalorder %s218, %s219
      %p231 = scmp.eq.s32.totalorder %s27, 1
      %p232 = por %p230, %p231
      %p234 = scmp.ne.s32.totalorder %s219, %s233
      %p235 = scmp.eq.s32.totalorder %s27, 0
      %p236 = por %p234, %p235
      %s238 = sadd.s32 %s237, 1
      %p241 = scmp.eq.s32.totalorder %s21, 1
      %p242 = scmp.ne.s32.totalorder %s237, %s239
      %p243 = scmp.eq.s32.totalorder %s21, 0
      %p244 = por %p242, %p243
      %p245 = scmp.ne.s32.totalorder %s237, %s239
      %p246 = scmp.eq.s32.totalorder %s26, 1
      %p247 = por %p245, %p246
      %p248 = scmp.ne.s32.totalorder %s239, %s240
      %p249 = scmp.eq.s32.totalorder %s26, 0
      %p250 = por %p248, %p249
      %p251 = scmp.ne.s32.totalorder %s239, %s240
      %p252 = scmp.eq.s32.totalorder %s27, 1
      %p253 = por %p251, %p252
      %p255 = scmp.ne.s32.totalorder %s240, %s254
      %p256 = scmp.eq.s32.totalorder %s27, 0
      %p257 = por %p255, %p256
      %s258 = ssub.s32 %s28, %s40
      %p259 = scmp.eq.s32.totalorder %s258, 0
      %s261 = sadd.s32 %s260, 1
      %s262 = scalar_select %p259, %s260, %s261
      %p265 = pneg %p259
      %p266 = scmp.eq.s32.totalorder %s21, 1
      %p267 = por %p265, %p266
      %p268 = scmp.ne.s32.totalorder %s260, %s263
      %p269 = scmp.eq.s32.totalorder %s21, 0
      %p270 = por %p268, %p269
      %p271 = scmp.ne.s32.totalorder %s260, %s263
      %p272 = scmp.eq.s32.totalorder %s26, 1
      %p273 = por %p271, %p272
      %p274 = scmp.ne.s32.totalorder %s263, %s264
      %p275 = scmp.eq.s32.totalorder %s26, 0
      %p276 = por %p274, %p275
      %p277 = scmp.ne.s32.totalorder %s263, %s264
      %p278 = scmp.eq.s32.totalorder %s27, 1
      %p279 = por %p277, %p278
      %p281 = scmp.ne.s32.totalorder %s264, %s280
      %p282 = scmp.eq.s32.totalorder %s27, 0
      %p283 = por %p281, %p282
      %p284 = scmp.le.s32.totalorder 1, %s21
      %p285 = scmp.lt.s32.totalorder %s21, 3
      %p286 = pnand %p284, %p285
      %p287 = pneg %p286
      // Predicated region
      $region9: #{tpu_custom_call.1} parent=5 // pred_check
        _
      $region10: #{tpu_custom_call.1} parent=5 // pred_check_branch
        %289 = sbr.rel (%p286) target = $region12
      $region11: #{tpu_custom_call.1} parent=5 // pred_region
        %s290 = ssub.s32 %s21, 1
        // Predicated region
        $region13: #{tpu_custom_call.1} parent=11 // pred_check
          %p291 = pneg %p82
        $region14: #{tpu_custom_call.1} parent=11 // pred_check_branch
          %293 = sbr.rel (%p291) target = $region16
        $region15: #{tpu_custom_call.1} parent=11 // pred_region
          _
        $region16: #{tpu_custom_call.1} parent=11 // pred_fallthru
          _
        // Predicated region
        $region17: #{tpu_custom_call.1} parent=11 // pred_check
          %p294 = pneg %p103
        $region18: #{tpu_custom_call.1} parent=11 // pred_check_branch
          %296 = sbr.rel (%p294) target = $region20
        $region19: #{tpu_custom_call.1} parent=11 // pred_region
          _
        $region20: #{tpu_custom_call.1} parent=11 // pred_fallthru
          _
        // Predicated region
        $region21: #{tpu_custom_call.1} parent=11 // pred_check
          %p297 = pneg %p124
        $region22: #{tpu_custom_call.1} parent=11 // pred_check_branch
          %299 = sbr.rel (%p297) target = $region24
        $region23: #{tpu_custom_call.1} parent=11 // pred_region
          %s301 = ssub.s32 16, 16
          %302 = vsyncadd [#allocation3], %s301
          %s304 = sshll.u32 [#allocation2], 4
          %s305 = int_to_ptr.vmem [resolvable:$true] %s304
          %307 = dma.hbm_to_vmem [thread:$0]  %s3, 16, %s305, [#allocation3]
        $region24: #{tpu_custom_call.1} parent=11 // pred_fallthru
          _
        // Predicated region
        $region25: #{tpu_custom_call.1} parent=11 // pred_check
          %p308 = pneg %p145
        $region26: #{tpu_custom_call.1} parent=11 // pred_check_branch
          %310 = sbr.rel (%p308) target = $region28
        $region27: #{tpu_custom_call.1} parent=11 // pred_region
          _
        $region28: #{tpu_custom_call.1} parent=11 // pred_fallthru
          _
        // Predicated region
        $region29: #{tpu_custom_call.1} parent=11 // pred_check
          %p311 = pneg %p166
        $region30: #{tpu_custom_call.1} parent=11 // pred_check_branch
          %313 = sbr.rel (%p311) target = $region32
        $region31: #{tpu_custom_call.1} parent=11 // pred_region
          _
        $region32: #{tpu_custom_call.1} parent=11 // pred_fallthru
          _
        // Predicated region
        $region33: #{tpu_custom_call.1} parent=11 // pred_check
          %p314 = pneg %p187
        $region34: #{tpu_custom_call.1} parent=11 // pred_check_branch
          %316 = sbr.rel (%p314) target = $region36
        $region35: #{tpu_custom_call.1} parent=11 // pred_region
          _
        $region36: #{tpu_custom_call.1} parent=11 // pred_fallthru
          _
        // Predicated region
        $region37: #{tpu_custom_call.1} parent=11 // pred_check
          %p317 = pneg %p208
        $region38: #{tpu_custom_call.1} parent=11 // pred_check_branch
          %319 = sbr.rel (%p317) target = $region40
        $region39: #{tpu_custom_call.1} parent=11 // pred_region
          %s321 = ssub.s32 8192, 8192
          %322 = vsyncadd [#allocation6], %s321
          %s323 = sshll.u32 [#allocation5], 4
          %s324 = int_to_ptr.vmem [resolvable:$true] %s323
          %329 = dma.hbm_to_vmem [thread:$0]  %s7, 8192, %s324, [#allocation6], 512, 512, 32
        $region40: #{tpu_custom_call.1} parent=11 // pred_fallthru
          _
        // Predicated region
        $region41: #{tpu_custom_call.1} parent=11 // pred_check
          %p330 = pneg %p229
        $region42: #{tpu_custom_call.1} parent=11 // pred_check_branch
          %332 = sbr.rel (%p330) target = $region44
        $region43: #{tpu_custom_call.1} parent=11 // pred_region
          _
        $region44: #{tpu_custom_call.1} parent=11 // pred_fallthru
          _
        // Predicated region
        $region45: #{tpu_custom_call.1} parent=11 // pred_check
          %p333 = pneg %p250
        $region46: #{tpu_custom_call.1} parent=11 // pred_check_branch
          %335 = sbr.rel (%p333) target = $region48
        $region47: #{tpu_custom_call.1} parent=11 // pred_region
          _
        $region48: #{tpu_custom_call.1} parent=11 // pred_fallthru
          _
      $region12: #{tpu_custom_call.1} parent=5 // pred_fallthru
        _
      %p336 = scmp.lt.s32.totalorder %s21, 2
      // Predicated region
      $region49: #{tpu_custom_call.1} parent=5 // pred_check
        %p337 = pneg %p336
      $region50: #{tpu_custom_call.1} parent=5 // pred_check_branch
        %339 = sbr.rel (%p337) target = $region52
      $region51: #{tpu_custom_call.1} parent=5 // pred_region
        // Predicated region
        $region53: #{tpu_custom_call.1} parent=51 // pred_check
          %p340 = pneg %p55
        $region54: #{tpu_custom_call.1} parent=51 // pred_check_branch
          %342 = sbr.rel (%p340) target = $region56
        $region55: #{tpu_custom_call.1} parent=51 // pred_region
          %s343 = smul.u32 2, %s29
          %p344 = scmp.lt.s32.totalorder %s28, 1
          %s345 = scalar_select %p344, %s28, 1
          %p346 = scmp.lt.s32.totalorder %s343, 1
          %s347 = scalar_select %p346, %s343, 1
          %s348 = smul.addr %s345, 2
          %s349 = sadd.s32 %s347, %s348
          %s350 = smul.addr %s349, 8
          %s351 = scalar_lea.vmem %s0, %s350
          %s352 = smul.u32 2, %s29
        $region56: #{tpu_custom_call.1} parent=51 // pred_fallthru
          _
      $region52: #{tpu_custom_call.1} parent=5 // pred_fallthru
        _
      %p353 = scmp.le.s32.totalorder 1, %s21
      %p354 = scmp.lt.s32.totalorder %s21, 3
      %p355 = pnand %p353, %p354
      %p356 = pneg %p355
      // Predicated region
      $region57: #{tpu_custom_call.1} parent=5 // pred_check
        _
      $region58: #{tpu_custom_call.1} parent=5 // pred_check_branch
        %358 = sbr.rel (%p355) target = $region60
      $region59: #{tpu_custom_call.1} parent=5 // pred_region
        %s359 = ssub.s32 %s21, 1
        // Predicated region
        $region61: #{tpu_custom_call.1} parent=59 // pred_check
          %p360 = pneg %p124
        $region62: #{tpu_custom_call.1} parent=59 // pred_check_branch
          %362 = sbr.rel (%p360) target = $region64
        $region63: #{tpu_custom_call.1} parent=59 // pred_region
          %363 = dma.done [#allocation3], 16
        $region64: #{tpu_custom_call.1} parent=59 // pred_fallthru
          _
        // Predicated region
        $region65: #{tpu_custom_call.1} parent=59 // pred_check
          %p364 = pneg %p208
        $region66: #{tpu_custom_call.1} parent=59 // pred_check_branch
          %366 = sbr.rel (%p364) target = $region68
        $region67: #{tpu_custom_call.1} parent=59 // pred_region
          %367 = dma.done [#allocation6], 8192
        $region68: #{tpu_custom_call.1} parent=59 // pred_fallthru
          _
        %s368 = smul.u32 2, %s31
        %p369 = scmp.lt.s32.totalorder %s30, 1
        %s370 = scalar_select %p369, %s30, 1
        %p371 = scmp.lt.s32.totalorder %s368, 1
        %s372 = scalar_select %p371, %s368, 1
        %s373 = smul.addr %s370, 2
        %s374 = sadd.s32 %s372, %s373
        %s375 = smul.addr %s374, 8
        %s376 = scalar_lea.vmem %s0, %s375
        %p377 = pneg %p61
        %p378 = pneg %p58
        %p379 = pneg %p82
        %p380 = pneg %p79
        %p381 = pneg %p103
        %p382 = pneg %p100
        %p383 = pneg %p124
        %p384 = pneg %p121
        %p385 = pneg %p145
        %p386 = pneg %p142
        %p387 = pneg %p166
        %p388 = pneg %p163
        %p389 = pneg %p187
        %p390 = pneg %p184
        %p391 = pneg %p208
        %p392 = pneg %p205
        %p393 = pneg %p229
        %p394 = pneg %p226
        %p395 = pneg %p250
        %p396 = pneg %p247
        %p397 = pneg %p276
        %p398 = pneg %p273
        %s399 = sand.u32 %s263, 1
        %s400 = scalar_lea.sflag [#allocation4], %s399
        %s401 = sand.u32 %s263, 1
        %s402 = smul.addr %s401, 8
        %s403 = scalar_lea.vmem [#allocation7], %s402
        %s404 = smul.u32 2, %s31
        %p405 = scmp.lt.s32.totalorder %s30, 1
        %s406 = scalar_select %p405, %s30, 1
        %p407 = scmp.lt.s32.totalorder %s404, 1
        %s408 = scalar_select %p407, %s404, 1
        %s409 = smul.addr %s406, 2
        %s410 = sadd.s32 %s408, %s409
        %s411 = smul.addr %s410, 8
        %s412 = scalar_lea.vmem %s0, %s411
        %s413 = smul.u32 2, %s31
        %p415 = scmp.eq.s32.totalorder %s31, 0
        // Predicated region
        $region69: #{tpu_custom_call.1} parent=59 // pred_check
          %p416 = pneg %p415
        $region70: #{tpu_custom_call.1} parent=59 // pred_check_branch
          %418 = sbr.rel (%p416) target = $region72
        $region71: #{tpu_custom_call.1} parent=59 // pred_region
          %419 = vst [vmem:[%s403] sm:$0xff] -3.4028235e+38
        $region72: #{tpu_custom_call.1} parent=59 // pred_fallthru
          _
        %v420 = vld [vmem:[%s412] sm:$0xff]
        %v421 = vld [vmem:[%s412 + $0x8] sm:$0xff]
        %v422 = vld [vmem:[%s1] sm:$0x7]
        %vm423 = vcmask 23552
        %v425 = vsel %vm423, %v420, 0
        %v428 = vsel %vm423, %v421, 0
        %vm430 = vcmask 1042432
        %v432 = vsel %vm430, %v422, 0
        %434 = vmatprep.subr.mxu0 0.0
        %435 = vmatpush1.msra.mxu0 %v432
        %436 = vmatprep.subr.mxu0 0.0
        %437 = vmatpush1.msra.mxu0 0.0
        %438 = vmatprep.subr.mxu0 0.0
        %439 = vmatpush1.msra.mxu0 0.0
        %440 = vmatprep.subr.mxu0 0.0
        %441 = vmatpush1.msra.mxu0 0.0
        %442 = vmatprep.subr.mxu0 0.0
        %443 = vmatpush1.msra.mxu0 0.0
        %444 = vmatprep.subr.mxu0 0.0
        %445 = vmatpush1.msra.mxu0 0.0
        %446 = vmatprep.subr.mxu0 0.0
        %447 = vmatpush1.msra.mxu0 0.0
        %448 = vmatprep.subr.mxu0 0.0
        %449 = vmatpush1.msra.mxu0 0.0
        %450 = vmatprep.subr.mxu0 0.0
        %451 = vmatpush1.msra.mxu0 0.0
        %452 = vmatprep.subr.mxu0 0.0
        %453 = vmatpush1.msra.mxu0 0.0
        %454 = vmatprep.subr.mxu0 0.0
        %455 = vmatpush1.msra.mxu0 0.0
        %456 = vmatprep.subr.mxu0 0.0
        %457 = vmatpush1.msra.mxu0 0.0
        %458 = vmatprep.subr.mxu0 0.0
        %459 = vmatpush1.msra.mxu0 0.0
        %460 = vmatprep.subr.mxu0 0.0
        %461 = vmatpush1.msra.mxu0 0.0
        %462 = vmatprep.subr.mxu0 0.0
        %463 = vmatpush1.msra.mxu0 0.0
        %464 = vmatprep.subr.mxu0 0.0
        %465 = vmatpush1.msra.mxu0 0.0
        %466 = vmatprep.subr.mxu0 0.0
        %467 = vmatpush1.msra.mxu0 0.0
        %468 = vmatprep.subr.mxu0 0.0
        %469 = vmatpush1.msra.mxu0 0.0
        %470 = vmatprep.subr.mxu0 0.0
        %471 = vmatpush1.msra.mxu0 0.0
        %472 = vmatprep.subr.mxu0 0.0
        %473 = vmatpush1.msra.mxu0 0.0
        %474 = vmatprep.subr.mxu0 0.0
        %475 = vmatpush1.msra.mxu0 0.0
        %476 = vmatprep.subr.mxu0 0.0
        %477 = vmatpush1.msra.mxu0 0.0
        %478 = vmatprep.subr.mxu0 0.0
        %479 = vmatpush1.msra.mxu0 0.0
        %480 = vmatprep.subr.mxu0 0.0
        %481 = vmatpush1.msra.mxu0 0.0
        %482 = vmatprep.subr.mxu0 0.0
        %483 = vmatpush1.msra.mxu0 0.0
        %484 = vmatprep.subr.mxu0 0.0
        %485 = vmatpush1.msra.mxu0 0.0
        %486 = vmatprep.subr.mxu0 0.0
        %487 = vmatpush1.msra.mxu0 0.0
        %488 = vmatprep.subr.mxu0 0.0
        %489 = vmatpush1.msra.mxu0 0.0
        %490 = vmatprep.subr.mxu0 0.0
        %491 = vmatpush1.msra.mxu0 0.0
        %492 = vmatprep.subr.mxu0 0.0
        %493 = vmatpush1.msra.mxu0 0.0
        %494 = vmatprep.subr.mxu0 0.0
        %495 = vmatpush1.msra.mxu0 0.0
        %496 = vmatprep.subr.mxu0 0.0
        %497 = vmatpush1.msra.mxu0 0.0
        %498 = vmatprep.mubr.f32.mxu0 0.0
        %499 = vmatmul.mubr.f32.gmra.mrb[0].mxu0 %v425
        %v500 = vpop.f32.mrb[0].mxu0
        %v501 = vadd.f32 0.0, %v500
        %v502 = vpop.f32.mrb[0].mxu0
        %503 = vmatprep.mubr.f32.mxu0 0.0
        %504 = vmatmul.mubr.f32.gmra.mrb[0].mxu0 %v428
        %v505 = vpop.f32.mrb[0].mxu0
        %v506 = vadd.f32 0.0, %v505
        %v507 = vpop.f32.mrb[0].mxu0
        %508 = vdwg.mxu0
        %v509 = vld [vmem:[%s2] sm:$0x1]
        %v511 = vlaneseq
        %v512 = vshrl.u32 %v511, 7
        %v513 = vsub.s32 0, %v512
        %v514 = vrot.slane %v509, %v513
        %v516 = vmul.f32 %v501, %v514
        %v517 = vmul.f32 %v506, %v514
        %v518 = vld [vmem:[#allocation2] sm:$0x1]
        %v520 = vlaneseq
        %v521 = vshrl.u32 %v520, 7
        %v522 = vsub.s32 0, %v521
        %v523 = vrot.slane %v518, %v522
        %v525 = vadd.f32 %v516, %v523
        %v526 = vadd.f32 %v517, %v523
        %v527 = vmax.f32 %v525, 0.0
        %v528 = vmax.f32 %v526, 0.0
        %v529 = vpack.c.bf16 %v528, %v527
        %v530 = vld [vmem:[%s4] sm:$0xf]
        %v531 = vld [vmem:[%s4 + $0x4] sm:$0xf]
        %v532 = vld [vmem:[%s4 + $0x8] sm:$0xf]
        %v533 = vld [vmem:[%s4 + $0xc] sm:$0xf]
        %v534 = vld [vmem:[%s4 + $0x10] sm:$0xf]
        %v535 = vld [vmem:[%s4 + $0x14] sm:$0xf]
        %v536 = vld [vmem:[%s4 + $0x18] sm:$0xf]
        %v537 = vld [vmem:[%s4 + $0x1c] sm:$0xf]
        %v546 = vunpack.c.l.b16 %v530
        %v547 = vunpack.c.l.b16 %v531
        %v548 = vunpack.c.l.b16 %v532
        %v549 = vunpack.c.l.b16 %v533
        %v550 = vunpack.c.l.b16 %v534
        %v551 = vunpack.c.l.b16 %v535
        %v552 = vunpack.c.l.b16 %v536
        %v553 = vunpack.c.l.b16 %v537
        %v554 = vpack.c.b16 %v547, %v546
        %v555 = vpack.c.b16 %v549, %v548
        %v556 = vpack.c.b16 %v551, %v550
        %v557 = vpack.c.b16 %v553, %v552
        %vm562 = vcmask 523264
        %v564 = vsel %vm562, %v529, 0
        %566 = vmatprep.subr.bf16.mxu0 0
        %567 = vmatpush1.bf16.msra.mxu0 %v554
        %568 = vmatprep.subr.bf16.mxu0 0
        %569 = vmatpush1.bf16.msra.mxu0 %v555
        %570 = vmatprep.subr.bf16.mxu0 0
        %571 = vmatpush1.bf16.msra.mxu0 %v556
        %572 = vmatprep.subr.bf16.mxu0 0
        %573 = vmatpush1.bf16.msra.mxu0 %v557
        %574 = vmatprep.subr.bf16.mxu0 0
        %575 = vmatpush1.bf16.msra.mxu0 0
        %576 = vmatprep.subr.bf16.mxu0 0
        %577 = vmatpush1.bf16.msra.mxu0 0
        %578 = vmatprep.subr.bf16.mxu0 0
        %579 = vmatpush1.bf16.msra.mxu0 0
        %580 = vmatprep.subr.bf16.mxu0 0
        %581 = vmatpush1.bf16.msra.mxu0 0
        %582 = vmatprep.subr.bf16.mxu0 0
        %583 = vmatpush1.bf16.msra.mxu0 0
        %584 = vmatprep.subr.bf16.mxu0 0
        %585 = vmatpush1.bf16.msra.mxu0 0
        %586 = vmatprep.subr.bf16.mxu0 0
        %587 = vmatpush1.bf16.msra.mxu0 0
        %588 = vmatprep.subr.bf16.mxu0 0
        %589 = vmatpush1.bf16.msra.mxu0 0
        %590 = vmatprep.subr.bf16.mxu0 0
        %591 = vmatpush1.bf16.msra.mxu0 0
        %592 = vmatprep.subr.bf16.mxu0 0
        %593 = vmatpush1.bf16.msra.mxu0 0
        %594 = vmatprep.subr.bf16.mxu0 0
        %595 = vmatpush1.bf16.msra.mxu0 0
        %596 = vmatprep.subr.bf16.mxu0 0
        %597 = vmatpush1.bf16.msra.mxu0 0
        %598 = vmatprep.mubr.bf16.mxu0 0
        %599 = vmatmul.mubr.bf16.gmra.mrb[0].mxu0 %v564
        %v600 = vpop.f32.mrb[0].mxu0
        %v601 = vadd.f32 0.0, %v600
        %v602 = vpop.f32.mrb[0].mxu0
        %v603 = vpop.f32.mrb[0].mxu0
        %v604 = vadd.f32 0.0, %v603
        %v605 = vpop.f32.mrb[0].mxu0
        %606 = vdwg.mxu0
        %v607 = vld [vmem:[%s5] sm:$0x1]
        %v609 = vlaneseq
        %v610 = vshrl.u32 %v609, 7
        %v611 = vsub.s32 0, %v610
        %v612 = vrot.slane %v607, %v611
        %v614 = vmul.f32 %v601, %v612
        %v615 = vmul.f32 %v604, %v612
        %v616 = vld [vmem:[%s6] sm:$0x1]
        %v618 = vlaneseq
        %v619 = vshrl.u32 %v618, 7
        %v620 = vsub.s32 0, %v619
        %v621 = vrot.slane %v616, %v620
        %v623 = vadd.f32 %v614, %v621
        %v624 = vadd.f32 %v615, %v621
        %v625 = vmax.f32 %v623, 0.0
        %v626 = vmax.f32 %v624, 0.0
        %v627 = vpack.c.bf16 %v626, %v625
        %v628 = vld [vmem:[#allocation5] sm:$0xff]
        %v629 = vld [vmem:[#allocation5 + $0x8] sm:$0xff]
        %v630 = vld [vmem:[#allocation5 + $0x10] sm:$0xff]
        %v631 = vld [vmem:[#allocation5 + $0x18] sm:$0xff]
        %v632 = vld [vmem:[#allocation5 + $0x20] sm:$0xff]
        %v633 = vld [vmem:[#allocation5 + $0x28] sm:$0xff]
        %v634 = vld [vmem:[#allocation5 + $0x30] sm:$0xff]
        %v635 = vld [vmem:[#allocation5 + $0x38] sm:$0xff]
        %v636 = vld [vmem:[#allocation5 + $0x40] sm:$0xff]
        %v637 = vld [vmem:[#allocation5 + $0x48] sm:$0xff]
        %v638 = vld [vmem:[#allocation5 + $0x50] sm:$0xff]
        %v639 = vld [vmem:[#allocation5 + $0x58] sm:$0xff]
        %v640 = vld [vmem:[#allocation5 + $0x60] sm:$0xff]
        %v641 = vld [vmem:[#allocation5 + $0x68] sm:$0xff]
        %v642 = vld [vmem:[#allocation5 + $0x70] sm:$0xff]
        %v643 = vld [vmem:[#allocation5 + $0x78] sm:$0xff]
        %v644 = vld [vmem:[#allocation5 + $0x80] sm:$0xff]
        %v645 = vld [vmem:[#allocation5 + $0x88] sm:$0xff]
        %v646 = vld [vmem:[#allocation5 + $0x90] sm:$0xff]
        %v647 = vld [vmem:[#allocation5 + $0x98] sm:$0xff]
        %v648 = vld [vmem:[#allocation5 + $0xa0] sm:$0xff]
        %v649 = vld [vmem:[#allocation5 + $0xa8] sm:$0xff]
        %v650 = vld [vmem:[#allocation5 + $0xb0] sm:$0xff]
        %v651 = vld [vmem:[#allocation5 + $0xb8] sm:$0xff]
        %v652 = vld [vmem:[#allocation5 + $0xc0] sm:$0xff]
        %v653 = vld [vmem:[#allocation5 + $0xc8] sm:$0xff]
        %v654 = vld [vmem:[#allocation5 + $0xd0] sm:$0xff]
        %v655 = vld [vmem:[#allocation5 + $0xd8] sm:$0xff]
        %v656 = vld [vmem:[#allocation5 + $0xe0] sm:$0xff]
        %v657 = vld [vmem:[#allocation5 + $0xe8] sm:$0xff]
        %v658 = vld [vmem:[#allocation5 + $0xf0] sm:$0xff]
        %v659 = vld [vmem:[#allocation5 + $0xf8] sm:$0xff]
        %v660 = vld [vmem:[#allocation5 + $0x100] sm:$0xff]
        %v661 = vld [vmem:[#allocation5 + $0x108] sm:$0xff]
        %v662 = vld [vmem:[#allocation5 + $0x110] sm:$0xff]
        %v663 = vld [vmem:[#allocation5 + $0x118] sm:$0xff]
        %v664 = vld [vmem:[#allocation5 + $0x120] sm:$0xff]
        %v665 = vld [vmem:[#allocation5 + $0x128] sm:$0xff]
        %v666 = vld [vmem:[#allocation5 + $0x130] sm:$0xff]
        %v667 = vld [vmem:[#allocation5 + $0x138] sm:$0xff]
        %v668 = vld [vmem:[#allocation5 + $0x140] sm:$0xff]
        %v669 = vld [vmem:[#allocation5 + $0x148] sm:$0xff]
        %v670 = vld [vmem:[#allocation5 + $0x150] sm:$0xff]
        %v671 = vld [vmem:[#allocation5 + $0x158] sm:$0xff]
        %v672 = vld [vmem:[#allocation5 + $0x160] sm:$0xff]
        %v673 = vld [vmem:[#allocation5 + $0x168] sm:$0xff]
        %v674 = vld [vmem:[#allocation5 + $0x170] sm:$0xff]
        %v675 = vld [vmem:[#allocation5 + $0x178] sm:$0xff]
        %v676 = vld [vmem:[#allocation5 + $0x180] sm:$0xff]
        %v677 = vld [vmem:[#allocation5 + $0x188] sm:$0xff]
        %v678 = vld [vmem:[#allocation5 + $0x190] sm:$0xff]
        %v679 = vld [vmem:[#allocation5 + $0x198] sm:$0xff]
        %v680 = vld [vmem:[#allocation5 + $0x1a0] sm:$0xff]
        %v681 = vld [vmem:[#allocation5 + $0x1a8] sm:$0xff]
        %v682 = vld [vmem:[#allocation5 + $0x1b0] sm:$0xff]
        %v683 = vld [vmem:[#allocation5 + $0x1b8] sm:$0xff]
        %v684 = vld [vmem:[#allocation5 + $0x1c0] sm:$0xff]
        %v685 = vld [vmem:[#allocation5 + $0x1c8] sm:$0xff]
        %v686 = vld [vmem:[#allocation5 + $0x1d0] sm:$0xff]
        %v687 = vld [vmem:[#allocation5 + $0x1d8] sm:$0xff]
        %v688 = vld [vmem:[#allocation5 + $0x1e0] sm:$0xff]
        %v689 = vld [vmem:[#allocation5 + $0x1e8] sm:$0xff]
        %v690 = vld [vmem:[#allocation5 + $0x1f0] sm:$0xff]
        %v691 = vld [vmem:[#allocation5 + $0x1f8] sm:$0xff]
        %v756 = vunpack.c.l.b16 %v628
        %v757 = vunpack.c.h.b16 %v628
        %v758 = vunpack.c.l.b16 %v629
        %v759 = vunpack.c.h.b16 %v629
        %v760 = vunpack.c.l.b16 %v630
        %v761 = vunpack.c.h.b16 %v630
        %v762 = vunpack.c.l.b16 %v631
        %v763 = vunpack.c.h.b16 %v631
        %v764 = vunpack.c.l.b16 %v632
        %v765 = vunpack.c.h.b16 %v632
        %v766 = vunpack.c.l.b16 %v633
        %v767 = vunpack.c.h.b16 %v633
        %v768 = vunpack.c.l.b16 %v634
        %v769 = vunpack.c.h.b16 %v634
        %v770 = vunpack.c.l.b16 %v635
        %v771 = vunpack.c.h.b16 %v635
        %v772 = vunpack.c.l.b16 %v636
        %v773 = vunpack.c.h.b16 %v636
        %v774 = vunpack.c.l.b16 %v637
        %v775 = vunpack.c.h.b16 %v637
        %v776 = vunpack.c.l.b16 %v638
        %v777 = vunpack.c.h.b16 %v638
        %v778 = vunpack.c.l.b16 %v639
        %v779 = vunpack.c.h.b16 %v639
        %v780 = vunpack.c.l.b16 %v640
        %v781 = vunpack.c.h.b16 %v640
        %v782 = vunpack.c.l.b16 %v641
        %v783 = vunpack.c.h.b16 %v641
        %v784 = vunpack.c.l.b16 %v642
        %v785 = vunpack.c.h.b16 %v642
        %v786 = vunpack.c.l.b16 %v643
        %v787 = vunpack.c.h.b16 %v643
        %v788 = vunpack.c.l.b16 %v644
        %v789 = vunpack.c.h.b16 %v644
        %v790 = vunpack.c.l.b16 %v645
        %v791 = vunpack.c.h.b16 %v645
        %v792 = vunpack.c.l.b16 %v646
        %v793 = vunpack.c.h.b16 %v646
        %v794 = vunpack.c.l.b16 %v647
        %v795 = vunpack.c.h.b16 %v647
        %v796 = vunpack.c.l.b16 %v648
        %v797 = vunpack.c.h.b16 %v648
        %v798 = vunpack.c.l.b16 %v649
        %v799 = vunpack.c.h.b16 %v649
        %v800 = vunpack.c.l.b16 %v650
        %v801 = vunpack.c.h.b16 %v650
        %v802 = vunpack.c.l.b16 %v651
        %v803 = vunpack.c.h.b16 %v651
        %v804 = vunpack.c.l.b16 %v652
        %v805 = vunpack.c.h.b16 %v652
        %v806 = vunpack.c.l.b16 %v653
        %v807 = vunpack.c.h.b16 %v653
        %v808 = vunpack.c.l.b16 %v654
        %v809 = vunpack.c.h.b16 %v654
        %v810 = vunpack.c.l.b16 %v655
        %v811 = vunpack.c.h.b16 %v655
        %v812 = vunpack.c.l.b16 %v656
        %v813 = vunpack.c.h.b16 %v656
        %v814 = vunpack.c.l.b16 %v657
        %v815 = vunpack.c.h.b16 %v657
        %v816 = vunpack.c.l.b16 %v658
        %v817 = vunpack.c.h.b16 %v658
        %v818 = vunpack.c.l.b16 %v659
        %v819 = vunpack.c.h.b16 %v659
        %v820 = vunpack.c.l.b16 %v660
        %v821 = vunpack.c.h.b16 %v660
        %v822 = vunpack.c.l.b16 %v661
        %v823 = vunpack.c.h.b16 %v661
        %v824 = vunpack.c.l.b16 %v662
        %v825 = vunpack.c.h.b16 %v662
        %v826 = vunpack.c.l.b16 %v663
        %v827 = vunpack.c.h.b16 %v663
        %v828 = vunpack.c.l.b16 %v664
        %v829 = vunpack.c.h.b16 %v664
        %v830 = vunpack.c.l.b16 %v665
        %v831 = vunpack.c.h.b16 %v665
        %v832 = vunpack.c.l.b16 %v666
        %v833 = vunpack.c.h.b16 %v666
        %v834 = vunpack.c.l.b16 %v667
        %v835 = vunpack.c.h.b16 %v667
        %v836 = vunpack.c.l.b16 %v668
        %v837 = vunpack.c.h.b16 %v668
        %v838 = vunpack.c.l.b16 %v669
        %v839 = vunpack.c.h.b16 %v669
        %v840 = vunpack.c.l.b16 %v670
        %v841 = vunpack.c.h.b16 %v670
        %v842 = vunpack.c.l.b16 %v671
        %v843 = vunpack.c.h.b16 %v671
        %v844 = vunpack.c.l.b16 %v672
        %v845 = vunpack.c.h.b16 %v672
        %v846 = vunpack.c.l.b16 %v673
        %v847 = vunpack.c.h.b16 %v673
        %v848 = vunpack.c.l.b16 %v674
        %v849 = vunpack.c.h.b16 %v674
        %v850 = vunpack.c.l.b16 %v675
        %v851 = vunpack.c.h.b16 %v675
        %v852 = vunpack.c.l.b16 %v676
        %v853 = vunpack.c.h.b16 %v676
        %v854 = vunpack.c.l.b16 %v677
        %v855 = vunpack.c.h.b16 %v677
        %v856 = vunpack.c.l.b16 %v678
        %v857 = vunpack.c.h.b16 %v678
        %v858 = vunpack.c.l.b16 %v679
        %v859 = vunpack.c.h.b16 %v679
        %v860 = vunpack.c.l.b16 %v680
        %v861 = vunpack.c.h.b16 %v680
        %v862 = vunpack.c.l.b16 %v681
        %v863 = vunpack.c.h.b16 %v681
        %v864 = vunpack.c.l.b16 %v682
        %v865 = vunpack.c.h.b16 %v682
        %v866 = vunpack.c.l.b16 %v683
        %v867 = vunpack.c.h.b16 %v683
        %v868 = vunpack.c.l.b16 %v684
        %v869 = vunpack.c.h.b16 %v684
        %v870 = vunpack.c.l.b16 %v685
        %v871 = vunpack.c.h.b16 %v685
        %v872 = vunpack.c.l.b16 %v686
        %v873 = vunpack.c.h.b16 %v686
        %v874 = vunpack.c.l.b16 %v687
        %v875 = vunpack.c.h.b16 %v687
        %v876 = vunpack.c.l.b16 %v688
        %v877 = vunpack.c.h.b16 %v688
        %v878 = vunpack.c.l.b16 %v689
        %v879 = vunpack.c.h.b16 %v689
        %v880 = vunpack.c.l.b16 %v690
        %v881 = vunpack.c.h.b16 %v690
        %v882 = vunpack.c.l.b16 %v691
        %v883 = vunpack.c.h.b16 %v691
        %v884 = vpack.c.b16 %v764, %v756
        %v885 = vpack.c.b16 %v765, %v757
        %v886 = vpack.c.b16 %v766, %v758
        %v887 = vpack.c.b16 %v767, %v759
        %v888 = vpack.c.b16 %v768, %v760
        %v889 = vpack.c.b16 %v769, %v761
        %v890 = vpack.c.b16 %v770, %v762
        %v891 = vpack.c.b16 %v771, %v763
        %v892 = vpack.c.b16 %v780, %v772
        %v893 = vpack.c.b16 %v781, %v773
        %v894 = vpack.c.b16 %v782, %v774
        %v895 = vpack.c.b16 %v783, %v775
        %v896 = vpack.c.b16 %v784, %v776
        %v897 = vpack.c.b16 %v785, %v777
        %v898 = vpack.c.b16 %v786, %v778
        %v899 = vpack.c.b16 %v787, %v779
        %v900 = vpack.c.b16 %v796, %v788
        %v901 = vpack.c.b16 %v797, %v789
        %v902 = vpack.c.b16 %v798, %v790
        %v903 = vpack.c.b16 %v799, %v791
        %v904 = vpack.c.b16 %v800, %v792
        %v905 = vpack.c.b16 %v801, %v793
        %v906 = vpack.c.b16 %v802, %v794
        %v907 = vpack.c.b16 %v803, %v795
        %v908 = vpack.c.b16 %v812, %v804
        %v909 = vpack.c.b16 %v813, %v805
        %v910 = vpack.c.b16 %v814, %v806
        %v911 = vpack.c.b16 %v815, %v807
        %v912 = vpack.c.b16 %v816, %v808
        %v913 = vpack.c.b16 %v817, %v809
        %v914 = vpack.c.b16 %v818, %v810
        %v915 = vpack.c.b16 %v819, %v811
        %v916 = vpack.c.b16 %v828, %v820
        %v917 = vpack.c.b16 %v829, %v821
        %v918 = vpack.c.b16 %v830, %v822
        %v919 = vpack.c.b16 %v831, %v823
        %v920 = vpack.c.b16 %v832, %v824
        %v921 = vpack.c.b16 %v833, %v825
        %v922 = vpack.c.b16 %v834, %v826
        %v923 = vpack.c.b16 %v835, %v827
        %v924 = vpack.c.b16 %v844, %v836
        %v925 = vpack.c.b16 %v845, %v837
        %v926 = vpack.c.b16 %v846, %v838
        %v927 = vpack.c.b16 %v847, %v839
        %v928 = vpack.c.b16 %v848, %v840
        %v929 = vpack.c.b16 %v849, %v841
        %v930 = vpack.c.b16 %v850, %v842
        %v931 = vpack.c.b16 %v851, %v843
        %v932 = vpack.c.b16 %v860, %v852
        %v933 = vpack.c.b16 %v861, %v853
        %v934 = vpack.c.b16 %v862, %v854
        %v935 = vpack.c.b16 %v863, %v855
        %v936 = vpack.c.b16 %v864, %v856
        %v937 = vpack.c.b16 %v865, %v857
        %v938 = vpack.c.b16 %v866, %v858
        %v939 = vpack.c.b16 %v867, %v859
        %v940 = vpack.c.b16 %v876, %v868
        %v941 = vpack.c.b16 %v877, %v869
        %v942 = vpack.c.b16 %v878, %v870
        %v943 = vpack.c.b16 %v879, %v871
        %v944 = vpack.c.b16 %v880, %v872
        %v945 = vpack.c.b16 %v881, %v873
        %v946 = vpack.c.b16 %v882, %v874
        %v947 = vpack.c.b16 %v883, %v875
        %1012 = vmatprep.subr.bf16.mxu0 %v885
        %1013 = vmatpush1.bf16.msra.mxu0 %v884
        %1014 = vmatprep.subr.bf16.mxu0 %v893
        %1015 = vmatpush1.bf16.msra.mxu0 %v892
        %1016 = vmatprep.subr.bf16.mxu0 %v901
        %1017 = vmatpush1.bf16.msra.mxu0 %v900
        %1018 = vmatprep.subr.bf16.mxu0 %v909
        %1019 = vmatpush1.bf16.msra.mxu0 %v908
        %1020 = vmatprep.subr.bf16.mxu0 %v917
        %1021 = vmatpush1.bf16.msra.mxu0 %v916
        %1022 = vmatprep.subr.bf16.mxu0 %v925
        %1023 = vmatpush1.bf16.msra.mxu0 %v924
        %1024 = vmatprep.subr.bf16.mxu0 %v933
        %1025 = vmatpush1.bf16.msra.mxu0 %v932
        %1026 = vmatprep.subr.bf16.mxu0 %v941
        %1027 = vmatpush1.bf16.msra.mxu0 %v940
        %1028 = vmatprep.subr.bf16.mxu0 0
        %1029 = vmatpush1.bf16.msra.mxu0 0
        %1030 = vmatprep.subr.bf16.mxu0 0
        %1031 = vmatpush1.bf16.msra.mxu0 0
        %1032 = vmatprep.subr.bf16.mxu0 0
        %1033 = vmatpush1.bf16.msra.mxu0 0
        %1034 = vmatprep.subr.bf16.mxu0 0
        %1035 = vmatpush1.bf16.msra.mxu0 0
        %1036 = vmatprep.subr.bf16.mxu0 0
        %1037 = vmatpush1.bf16.msra.mxu0 0
        %1038 = vmatprep.subr.bf16.mxu0 0
        %1039 = vmatpush1.bf16.msra.mxu0 0
        %1040 = vmatprep.subr.bf16.mxu0 0
        %1041 = vmatpush1.bf16.msra.mxu0 0
        %1042 = vmatprep.subr.bf16.mxu0 0
        %1043 = vmatpush1.bf16.msra.mxu0 0
        %1044 = vmatprep.mubr.bf16.mxu0 0
        %1045 = vmatmul.mubr.bf16.gmra.mrb[0].mxu0 %v627
        %v1046 = vpop.f32.mrb[0].mxu0
        %v1047 = vadd.f32 0.0, %v1046
        %v1048 = vpop.f32.mrb[0].mxu0
        %v1049 = vadd.f32 0.0, %v1048
        %v1050 = vpop.f32.mrb[0].mxu0
        %v1051 = vadd.f32 0.0, %v1050
        %v1052 = vpop.f32.mrb[0].mxu0
        %v1053 = vadd.f32 0.0, %v1052
        %1054 = vdwg.mxu0
        %1055 = vmatprep.subr.bf16.mxu0 %v887
        %1056 = vmatpush1.bf16.msra.mxu0 %v886
        %1057 = vmatprep.subr.bf16.mxu0 %v895
        %1058 = vmatpush1.bf16.msra.mxu0 %v894
        %1059 = vmatprep.subr.bf16.mxu0 %v903
        %1060 = vmatpush1.bf16.msra.mxu0 %v902
        %1061 = vmatprep.subr.bf16.mxu0 %v911
        %1062 = vmatpush1.bf16.msra.mxu0 %v910
        %1063 = vmatprep.subr.bf16.mxu0 %v919
        %1064 = vmatpush1.bf16.msra.mxu0 %v918
        %1065 = vmatprep.subr.bf16.mxu0 %v927
        %1066 = vmatpush1.bf16.msra.mxu0 %v926
        %1067 = vmatprep.subr.bf16.mxu0 %v935
        %1068 = vmatpush1.bf16.msra.mxu0 %v934
        %1069 = vmatprep.subr.bf16.mxu0 %v943
        %1070 = vmatpush1.bf16.msra.mxu0 %v942
        %1071 = vmatprep.subr.bf16.mxu0 0
        %1072 = vmatpush1.bf16.msra.mxu0 0
        %1073 = vmatprep.subr.bf16.mxu0 0
        %1074 = vmatpush1.bf16.msra.mxu0 0
        %1075 = vmatprep.subr.bf16.mxu0 0
        %1076 = vmatpush1.bf16.msra.mxu0 0
        %1077 = vmatprep.subr.bf16.mxu0 0
        %1078 = vmatpush1.bf16.msra.mxu0 0
        %1079 = vmatprep.subr.bf16.mxu0 0
        %1080 = vmatpush1.bf16.msra.mxu0 0
        %1081 = vmatprep.subr.bf16.mxu0 0
        %1082 = vmatpush1.bf16.msra.mxu0 0
        %1083 = vmatprep.subr.bf16.mxu0 0
        %1084 = vmatpush1.bf16.msra.mxu0 0
        %1085 = vmatprep.subr.bf16.mxu0 0
        %1086 = vmatpush1.bf16.msra.mxu0 0
        %1087 = vmatprep.mubr.bf16.mxu0 0
        %1088 = vmatmul.mubr.bf16.gmra.mrb[0].mxu0 %v627
        %v1089 = vpop.f32.mrb[0].mxu0
        %v1090 = vadd.f32 0.0, %v1089
        %v1091 = vpop.f32.mrb[0].mxu0
        %v1092 = vadd.f32 0.0, %v1091
        %v1093 = vpop.f32.mrb[0].mxu0
        %v1094 = vadd.f32 0.0, %v1093
        %v1095 = vpop.f32.mrb[0].mxu0
        %v1096 = vadd.f32 0.0, %v1095
        %1097 = vdwg.mxu0
        %1098 = vmatprep.subr.bf16.mxu0 %v889
        %1099 = vmatpush1.bf16.msra.mxu0 %v888
        %1100 = vmatprep.subr.bf16.mxu0 %v897
        %1101 = vmatpush1.bf16.msra.mxu0 %v896
        %1102 = vmatprep.subr.bf16.mxu0 %v905
        %1103 = vmatpush1.bf16.msra.mxu0 %v904
        %1104 = vmatprep.subr.bf16.mxu0 %v913
        %1105 = vmatpush1.bf16.msra.mxu0 %v912
        %1106 = vmatprep.subr.bf16.mxu0 %v921
        %1107 = vmatpush1.bf16.msra.mxu0 %v920
        %1108 = vmatprep.subr.bf16.mxu0 %v929
        %1109 = vmatpush1.bf16.msra.mxu0 %v928
        %1110 = vmatprep.subr.bf16.mxu0 %v937
        %1111 = vmatpush1.bf16.msra.mxu0 %v936
        %1112 = vmatprep.subr.bf16.mxu0 %v945
        %1113 = vmatpush1.bf16.msra.mxu0 %v944
        %1114 = vmatprep.subr.bf16.mxu0 0
        %1115 = vmatpush1.bf16.msra.mxu0 0
        %1116 = vmatprep.subr.bf16.mxu0 0
        %1117 = vmatpush1.bf16.msra.mxu0 0
        %1118 = vmatprep.subr.bf16.mxu0 0
        %1119 = vmatpush1.bf16.msra.mxu0 0
        %1120 = vmatprep.subr.bf16.mxu0 0
        %1121 = vmatpush1.bf16.msra.mxu0 0
        %1122 = vmatprep.subr.bf16.mxu0 0
        %1123 = vmatpush1.bf16.msra.mxu0 0
        %1124 = vmatprep.subr.bf16.mxu0 0
        %1125 = vmatpush1.bf16.msra.mxu0 0
        %1126 = vmatprep.subr.bf16.mxu0 0
        %1127 = vmatpush1.bf16.msra.mxu0 0
        %1128 = vmatprep.subr.bf16.mxu0 0
        %1129 = vmatpush1.bf16.msra.mxu0 0
        %1130 = vmatprep.mubr.bf16.mxu0 0
        %1131 = vmatmul.mubr.bf16.gmra.mrb[0].mxu0 %v627
        %v1132 = vpop.f32.mrb[0].mxu0
        %v1133 = vadd.f32 0.0, %v1132
        %v1134 = vpop.f32.mrb[0].mxu0
        %v1135 = vadd.f32 0.0, %v1134
        %v1136 = vpop.f32.mrb[0].mxu0
        %v1137 = vadd.f32 0.0, %v1136
        %v1138 = vpop.f32.mrb[0].mxu0
        %v1139 = vadd.f32 0.0, %v1138
        %1140 = vdwg.mxu0
        %1141 = vmatprep.subr.bf16.mxu0 %v891
        %1142 = vmatpush1.bf16.msra.mxu0 %v890
        %1143 = vmatprep.subr.bf16.mxu0 %v899
        %1144 = vmatpush1.bf16.msra.mxu0 %v898
        %1145 = vmatprep.subr.bf16.mxu0 %v907
        %1146 = vmatpush1.bf16.msra.mxu0 %v906
        %1147 = vmatprep.subr.bf16.mxu0 %v915
        %1148 = vmatpush1.bf16.msra.mxu0 %v914
        %1149 = vmatprep.subr.bf16.mxu0 %v923
        %1150 = vmatpush1.bf16.msra.mxu0 %v922
        %1151 = vmatprep.subr.bf16.mxu0 %v931
        %1152 = vmatpush1.bf16.msra.mxu0 %v930
        %1153 = vmatprep.subr.bf16.mxu0 %v939
        %1154 = vmatpush1.bf16.msra.mxu0 %v938
        %1155 = vmatprep.subr.bf16.mxu0 %v947
        %1156 = vmatpush1.bf16.msra.mxu0 %v946
        %1157 = vmatprep.subr.bf16.mxu0 0
        %1158 = vmatpush1.bf16.msra.mxu0 0
        %1159 = vmatprep.subr.bf16.mxu0 0
        %1160 = vmatpush1.bf16.msra.mxu0 0
        %1161 = vmatprep.subr.bf16.mxu0 0
        %1162 = vmatpush1.bf16.msra.mxu0 0
        %1163 = vmatprep.subr.bf16.mxu0 0
        %1164 = vmatpush1.bf16.msra.mxu0 0
        %1165 = vmatprep.subr.bf16.mxu0 0
        %1166 = vmatpush1.bf16.msra.mxu0 0
        %1167 = vmatprep.subr.bf16.mxu0 0
        %1168 = vmatpush1.bf16.msra.mxu0 0
        %1169 = vmatprep.subr.bf16.mxu0 0
        %1170 = vmatpush1.bf16.msra.mxu0 0
        %1171 = vmatprep.subr.bf16.mxu0 0
        %1172 = vmatpush1.bf16.msra.mxu0 0
        %1173 = vmatprep.mubr.bf16.mxu0 0
        %1174 = vmatmul.mubr.bf16.gmra.mrb[0].mxu0 %v627
        %v1175 = vpop.f32.mrb[0].mxu0
        %v1176 = vadd.f32 0.0, %v1175
        %v1177 = vpop.f32.mrb[0].mxu0
        %v1178 = vadd.f32 0.0, %v1177
        %v1179 = vpop.f32.mrb[0].mxu0
        %v1180 = vadd.f32 0.0, %v1179
        %v1181 = vpop.f32.mrb[0].mxu0
        %v1182 = vadd.f32 0.0, %v1181
        %1183 = vdwg.mxu0
        %v1184 = vld [vmem:[%s8] sm:$0xff]
        %v1186 = vlaneseq
        %v1187 = vshrl.u32 %v1186, 7
        %v1188 = vsub.s32 0, %v1187
        %v1189 = vrot.slane %v1184, %v1188
        %v1190 = vlaneseq
        %v1191 = vshrl.u32 %v1190, 7
        %v1192 = vsub.s32 1, %v1191
        %v1193 = vrot.slane %v1184, %v1192
        %v1194 = vlaneseq
        %v1195 = vshrl.u32 %v1194, 7
        %v1196 = vsub.s32 2, %v1195
        %v1197 = vrot.slane %v1184, %v1196
        %v1198 = vlaneseq
        %v1199 = vshrl.u32 %v1198, 7
        %v1200 = vsub.s32 3, %v1199
        %v1201 = vrot.slane %v1184, %v1200
        %v1202 = vlaneseq
        %v1203 = vshrl.u32 %v1202, 7
        %v1204 = vsub.s32 4, %v1203
        %v1205 = vrot.slane %v1184, %v1204
        %v1206 = vlaneseq
        %v1207 = vshrl.u32 %v1206, 7
        %v1208 = vsub.s32 5, %v1207
        %v1209 = vrot.slane %v1184, %v1208
        %v1210 = vlaneseq
        %v1211 = vshrl.u32 %v1210, 7
        %v1212 = vsub.s32 6, %v1211
        %v1213 = vrot.slane %v1184, %v1212
        %v1214 = vlaneseq
        %v1215 = vshrl.u32 %v1214, 7
        %v1216 = vsub.s32 7, %v1215
        %v1217 = vrot.slane %v1184, %v1216
        %v1226 = vmul.f32 %v1047, %v1189
        %v1227 = vmul.f32 %v1049, %v1193
        %v1228 = vmul.f32 %v1090, %v1197
        %v1229 = vmul.f32 %v1092, %v1201
        %v1230 = vmul.f32 %v1133, %v1205
        %v1231 = vmul.f32 %v1135, %v1209
        %v1232 = vmul.f32 %v1176, %v1213
        %v1233 = vmul.f32 %v1178, %v1217
        %v1234 = vmul.f32 %v1051, %v1189
        %v1235 = vmul.f32 %v1053, %v1193
        %v1236 = vmul.f32 %v1094, %v1197
        %v1237 = vmul.f32 %v1096, %v1201
        %v1238 = vmul.f32 %v1137, %v1205
        %v1239 = vmul.f32 %v1139, %v1209
        %v1240 = vmul.f32 %v1180, %v1213
        %v1241 = vmul.f32 %v1182, %v1217
        %v1242 = vld [vmem:[%s9] sm:$0xff]
        %v1244 = vlaneseq
        %v1245 = vshrl.u32 %v1244, 7
        %v1246 = vsub.s32 0, %v1245
        %v1247 = vrot.slane %v1242, %v1246
        %v1248 = vlaneseq
        %v1249 = vshrl.u32 %v1248, 7
        %v1250 = vsub.s32 1, %v1249
        %v1251 = vrot.slane %v1242, %v1250
        %v1252 = vlaneseq
        %v1253 = vshrl.u32 %v1252, 7
        %v1254 = vsub.s32 2, %v1253
        %v1255 = vrot.slane %v1242, %v1254
        %v1256 = vlaneseq
        %v1257 = vshrl.u32 %v1256, 7
        %v1258 = vsub.s32 3, %v1257
        %v1259 = vrot.slane %v1242, %v1258
        %v1260 = vlaneseq
        %v1261 = vshrl.u32 %v1260, 7
        %v1262 = vsub.s32 4, %v1261
        %v1263 = vrot.slane %v1242, %v1262
        %v1264 = vlaneseq
        %v1265 = vshrl.u32 %v1264, 7
        %v1266 = vsub.s32 5, %v1265
        %v1267 = vrot.slane %v1242, %v1266
        %v1268 = vlaneseq
        %v1269 = vshrl.u32 %v1268, 7
        %v1270 = vsub.s32 6, %v1269
        %v1271 = vrot.slane %v1242, %v1270
        %v1272 = vlaneseq
        %v1273 = vshrl.u32 %v1272, 7
        %v1274 = vsub.s32 7, %v1273
        %v1275 = vrot.slane %v1242, %v1274
        %v1284 = vadd.f32 %v1226, %v1247
        %v1285 = vadd.f32 %v1227, %v1251
        %v1286 = vadd.f32 %v1228, %v1255
        %v1287 = vadd.f32 %v1229, %v1259
        %v1288 = vadd.f32 %v1230, %v1263
        %v1289 = vadd.f32 %v1231, %v1267
        %v1290 = vadd.f32 %v1232, %v1271
        %v1291 = vadd.f32 %v1233, %v1275
        %v1292 = vadd.f32 %v1234, %v1247
        %v1293 = vadd.f32 %v1235, %v1251
        %v1294 = vadd.f32 %v1236, %v1255
        %v1295 = vadd.f32 %v1237, %v1259
        %v1296 = vadd.f32 %v1238, %v1263
        %v1297 = vadd.f32 %v1239, %v1267
        %v1298 = vadd.f32 %v1240, %v1271
        %v1299 = vadd.f32 %v1241, %v1275
        %v1300 = vmax.f32 %v1284, 0.0
        %v1301 = vmax.f32 %v1285, 0.0
        %v1302 = vmax.f32 %v1286, 0.0
        %v1303 = vmax.f32 %v1287, 0.0
        %v1304 = vmax.f32 %v1288, 0.0
        %v1305 = vmax.f32 %v1289, 0.0
        %v1306 = vmax.f32 %v1290, 0.0
        %v1307 = vmax.f32 %v1291, 0.0
        %v1308 = vmax.f32 %v1292, 0.0
        %v1309 = vmax.f32 %v1293, 0.0
        %v1310 = vmax.f32 %v1294, 0.0
        %v1311 = vmax.f32 %v1295, 0.0
        %v1312 = vmax.f32 %v1296, 0.0
        %v1313 = vmax.f32 %v1297, 0.0
        %v1314 = vmax.f32 %v1298, 0.0
        %v1315 = vmax.f32 %v1299, 0.0
        %v1316 = vld [vmem:[%s403] sm:$0xff]
        %v1317 = vmax.f32 %v1300, %v1308
        %v1318 = vrot.slane %v1317, 4
        %v1319 = vmax.f32 %v1317, %v1318
        %v1320 = vrot.slane %v1319, 2
        %v1321 = vmax.f32 %v1319, %v1320
        %v1322 = vrot.slane %v1321, 1
        %v1323 = vmax.f32 %v1321, %v1322
        %v1324 = vmax.f32 %v1301, %v1309
        %v1325 = vrot.slane %v1324, 4
        %v1326 = vmax.f32 %v1324, %v1325
        %v1327 = vrot.slane %v1326, 2
        %v1328 = vmax.f32 %v1326, %v1327
        %v1329 = vrot.slane %v1328, 1
        %v1330 = vmax.f32 %v1328, %v1329
        %v1331 = vmax.f32 %v1302, %v1310
        %v1332 = vrot.slane %v1331, 4
        %v1333 = vmax.f32 %v1331, %v1332
        %v1334 = vrot.slane %v1333, 2
        %v1335 = vmax.f32 %v1333, %v1334
        %v1336 = vrot.slane %v1335, 1
        %v1337 = vmax.f32 %v1335, %v1336
        %v1338 = vmax.f32 %v1303, %v1311
        %v1339 = vrot.slane %v1338, 4
        %v1340 = vmax.f32 %v1338, %v1339
        %v1341 = vrot.slane %v1340, 2
        %v1342 = vmax.f32 %v1340, %v1341
        %v1343 = vrot.slane %v1342, 1
        %v1344 = vmax.f32 %v1342, %v1343
        %v1345 = vmax.f32 %v1304, %v1312
        %v1346 = vrot.slane %v1345, 4
        %v1347 = vmax.f32 %v1345, %v1346
        %v1348 = vrot.slane %v1347, 2
        %v1349 = vmax.f32 %v1347, %v1348
        %v1350 = vrot.slane %v1349, 1
        %v1351 = vmax.f32 %v1349, %v1350
        %v1352 = vmax.f32 %v1305, %v1313
        %v1353 = vrot.slane %v1352, 4
        %v1354 = vmax.f32 %v1352, %v1353
        %v1355 = vrot.slane %v1354, 2
        %v1356 = vmax.f32 %v1354, %v1355
        %v1357 = vrot.slane %v1356, 1
        %v1358 = vmax.f32 %v1356, %v1357
        %v1359 = vmax.f32 %v1306, %v1314
        %v1360 = vrot.slane %v1359, 4
        %v1361 = vmax.f32 %v1359, %v1360
        %v1362 = vrot.slane %v1361, 2
        %v1363 = vmax.f32 %v1361, %v1362
        %v1364 = vrot.slane %v1363, 1
        %v1365 = vmax.f32 %v1363, %v1364
        %v1366 = vmax.f32 %v1307, %v1315
        %v1367 = vrot.slane %v1366, 4
        %v1368 = vmax.f32 %v1366, %v1367
        %v1369 = vrot.slane %v1368, 2
        %v1370 = vmax.f32 %v1368, %v1369
        %v1371 = vrot.slane %v1370, 1
        %v1372 = vmax.f32 %v1370, %v1371
        %v1381 = vcombine.low %v1323, %v1330
        %v1382 = vcombine.low %v1337, %v1344
        %v1383 = vcombine.low %v1351, %v1358
        %v1384 = vcombine.low %v1365, %v1372
        %v1386 = vunpack.c.l.s4 1966171168
        %v1387 = vunpack.c.0.s8 %v1386
        %v1388 = vlaneseq
        %v1389 = vshrl.u32 %v1388, 7
        %v1390 = vsub.s32 %v1387, %v1389
        %v1391 = vrot.slane %v1381, %v1390
        %v1393 = vunpack.c.l.s4 1966171168
        %v1394 = vunpack.c.0.s8 %v1393
        %v1395 = vlaneseq
        %v1396 = vshrl.u32 %v1395, 7
        %v1397 = vsub.s32 %v1394, %v1396
        %v1398 = vrot.slane %v1382, %v1397
        %v1400 = vunpack.c.l.s4 1966171168
        %v1401 = vunpack.c.0.s8 %v1400
        %v1402 = vlaneseq
        %v1403 = vshrl.u32 %v1402, 7
        %v1404 = vsub.s32 %v1401, %v1403
        %v1405 = vrot.slane %v1383, %v1404
        %v1407 = vunpack.c.l.s4 1966171168
        %v1408 = vunpack.c.0.s8 %v1407
        %v1409 = vlaneseq
        %v1410 = vshrl.u32 %v1409, 7
        %v1411 = vsub.s32 %v1408, %v1410
        %v1412 = vrot.slane %v1384, %v1411
        %v1413 = vcombine.low %v1391, %v1398
        %v1414 = vcombine.low %v1405, %v1412
        %v1416 = vunpack.c.l.s4 1966171168
        %v1417 = vunpack.c.0.s8 %v1416
        %v1418 = vlaneseq
        %v1419 = vshrl.u32 %v1418, 7
        %v1420 = vsub.s32 %v1417, %v1419
        %v1421 = vrot.slane %v1413, %v1420
        %v1423 = vunpack.c.l.s4 1966171168
        %v1424 = vunpack.c.0.s8 %v1423
        %v1425 = vlaneseq
        %v1426 = vshrl.u32 %v1425, 7
        %v1427 = vsub.s32 %v1424, %v1426
        %v1428 = vrot.slane %v1414, %v1427
        %v1429 = vcombine.low %v1421, %v1428
        %v1431 = vmax.f32 %v1316, %v1429
        %1432 = vst [vmem:[%s403] sm:$0xff] %v1431
        %s1433 = sand.u32 %s263, 1
        %s1434 = scalar_lea.sflag [#allocation4], %s1433
        %s1435 = sand.u32 %s263, 1
        %s1436 = smul.addr %s1435, 8
        %s1437 = scalar_lea.vmem [#allocation7], %s1436
        // Predicated region
        $region73: #{tpu_custom_call.1} parent=59 // pred_check
          %p1438 = pneg %p273
        $region74: #{tpu_custom_call.1} parent=59 // pred_check_branch
          %1440 = sbr.rel (%p1438) target = $region76
        $region75: #{tpu_custom_call.1} parent=59 // pred_region
          %s1442 = ssub.s32 128, 128
          %1443 = vsyncadd %s1434, %s1442
          %s1444 = smul.addr %s30, 8
          %s1445 = smul.addr %s1444, 16
          %s1446 = scalar_lea.hbm %s10, %s1445
          %s1448 = sshll.u32 %s1437, 4
          %s1449 = int_to_ptr.vmem [resolvable:$true] %s1448
          %1451 = dma.vmem_to_hbm [thread:$0]  %s1449, 128, %s1446, %s1434
        $region76: #{tpu_custom_call.1} parent=59 // pred_fallthru
          _
      $region60: #{tpu_custom_call.1} parent=5 // pred_fallthru
        _
      %p1452 = scmp.le.s32.totalorder 2, %s21
      // Predicated region
      $region77: #{tpu_custom_call.1} parent=5 // pred_check
        %p1453 = pneg %p1452
      $region78: #{tpu_custom_call.1} parent=5 // pred_check_branch
        %1455 = sbr.rel (%p1453) target = $region80
      $region79: #{tpu_custom_call.1} parent=5 // pred_region
        %s1456 = ssub.s32 %s21, 2
        // Predicated region
        $region81: #{tpu_custom_call.1} parent=79 // pred_check
          %p1457 = pneg %p279
        $region82: #{tpu_custom_call.1} parent=79 // pred_check_branch
          %1459 = sbr.rel (%p1457) target = $region84
        $region83: #{tpu_custom_call.1} parent=79 // pred_region
          %s1460 = sand.u32 %s264, 1
          %s1461 = scalar_lea.sflag [#allocation4], %s1460
          %s1462 = sand.u32 %s264, 1
          %s1463 = smul.addr %s1462, 8
          %s1464 = scalar_lea.vmem [#allocation7], %s1463
          %1465 = dma.done %s1461, 128
        $region84: #{tpu_custom_call.1} parent=79 // pred_fallthru
          _
      $region80: #{tpu_custom_call.1} parent=5 // pred_fallthru
        _
    $region6: #{tpu_custom_call.1} parent=1 // loop_footer
      %s25 = sadd.s32 1, %s21
    $region7: #{tpu_custom_call.1} parent=1 // loop_footer_branch
      %20 = sbr.rel target = $region3
    $region8: #{tpu_custom_call.1} parent=1 // loop_exit
      _
    %1466 = vsyncpa [#allocation3], 1
    %s1467 = scalar_lea.sflag [#allocation3], 1
    %1468 = vsyncpa %s1467, 1
    %1469 = vsyncpa [#allocation6], 1
    %1470 = vsyncpa [#allocation4], 1
    %s1471 = scalar_lea.sflag [#allocation4], 1
    %1472 = vsyncpa %s1471, 1

</llo_original>
